<compile_context>
chip_gen: v7x
topology: tpu7x:2x2x1
jax: 0.10.0
libtpu: 0.0.40
codegen_flags: <defaults>
</compile_context>

<pallas_src>
import math

import jax
import jax.numpy as jnp
from jax.experimental import pallas as pl
from jax.experimental.pallas import tpu as pltpu

# ----------------------------- small BERT config -----------------------------
VOCAB = 50
MAX_POS = 16
TYPE_VOCAB = 2
HIDDEN = 32
NUM_HEADS = 4
HEAD_DIM = HIDDEN // NUM_HEADS
NUM_LAYERS = 2
INTERMEDIATE = 64
NUM_INTENTS = 6
LN_EPS = 1e-12
CLS_PAD = 128          # lane-dense classifier output / slab width

BATCH = 2
SEQ = 8

# ------------------------ packed-slab row offsets (static) --------------------
# bf16 weight slab, shape (W_ROWS, CLS_PAD)
WQKV_OFF = 0                                        # L*H rows, width 3H
WO_OFF = WQKV_OFF + NUM_LAYERS * HIDDEN             # L*H rows, width H
W1_OFF = WO_OFF + NUM_LAYERS * HIDDEN               # L*H rows, width I
W2_OFF = W1_OFF + NUM_LAYERS * HIDDEN               # L*I rows, width H
POOLW_OFF = W2_OFF + NUM_LAYERS * INTERMEDIATE      # H rows,   width H
CLSW_OFF = POOLW_OFF + HIDDEN                       # H rows,   width CLS_PAD
W_ROWS = CLSW_OFF + HIDDEN

# f32 param slab, shape (P_ROWS, CLS_PAD): one row per bias / LN vector
EMB_LN_G_ROW = 0
EMB_LN_B_ROW = 1
POOL_B_ROW = 2
CLS_B_ROW = 3
LAYER_P_BASE = 4
LAYER_P_STRIDE = 8
# per-layer row offsets within a layer block:
#   +0 bqkv, +1 bo, +2 ln1_g, +3 ln1_b, +4 b1, +5 b2, +6 ln2_g, +7 ln2_b
P_ROWS = LAYER_P_BASE + NUM_LAYERS * LAYER_P_STRIDE


# ---------------------- single fused forward-pass kernel ----------------------
def _fused_intent_kernel(emb_ref, bias_ref, w_ref, p_ref, out_ref):
    f32 = jnp.float32
    bf16 = jnp.bfloat16
    H, I = HIDDEN, INTERMEDIATE
    scale = 1.0 / math.sqrt(HEAD_DIM)

    def layer_norm(x, g, b):
        mean = jnp.mean(x, axis=-1, keepdims=True)
        var = jnp.mean((x - mean) ** 2, axis=-1, keepdims=True)
        return (x - mean) * jax.lax.rsqrt(var + LN_EPS) * g + b

    def wrow(off, nrows, width):           # bf16 weight block from the slab
        return w_ref[off:off + nrows, 0:width]

    def prow(row, width):                  # f32 (1, width) bias / LN row
        return p_ref[row:row + 1, 0:width]

    bias2d = bias_ref[...]                 # (B*S, B*S) additive attention bias

    # ---- embedding LayerNorm ----
    x = layer_norm(emb_ref[...], prow(EMB_LN_G_ROW, H), prow(EMB_LN_B_ROW, H))

    for l in range(NUM_LAYERS):
        pbase = LAYER_P_BASE + l * LAYER_P_STRIDE

        # ---- fused Q/K/V projection: one (B*S, H) @ (H, 3H) matmul ----
        qkv = jnp.dot(x.astype(bf16), wrow(WQKV_OFF + l * H, H, 3 * H),
                      preferred_element_type=f32) + prow(pbase + 0, 3 * H)
        qkv_bf = qkv.astype(bf16)          # single bf16 cast per layer

        # ---- self-attention: per head, both batch elements fused; the head
        #      concat is folded into a per-head Wo-row-block accumulation ----
        attn = jnp.zeros((BATCH * SEQ, H), f32)
        for h in range(NUM_HEADS):
            c0 = h * HEAD_DIM
            q_h = qkv_bf[:, c0:c0 + HEAD_DIM]                       # (BS, Dh)
            k_h = qkv_bf[:, H + c0:H + c0 + HEAD_DIM]
            v_h = qkv_bf[:, 2 * H + c0:2 * H + c0 + HEAD_DIM]
            # q @ k^T via contraction on last dims (no materialized transpose);
            # bias2d masks both padded keys and cross-batch positions.
            s = jax.lax.dot_general(q_h, k_h, (((1,), (1,)), ((), ())),
                                    preferred_element_type=f32) * scale + bias2d
            s = s - jnp.max(s, axis=-1, keepdims=True)
            p = jnp.exp(s)
            p = p * pl.reciprocal(jnp.sum(p, axis=-1, keepdims=True), approx=True)
            ctx_h = jnp.dot(p.astype(bf16), v_h, preferred_element_type=f32)
            wo_h = wrow(WO_OFF + l * H + c0, HEAD_DIM, H)           # (Dh, H)
            attn = attn + jnp.dot(ctx_h.astype(bf16), wo_h,
                                  preferred_element_type=f32)

        # ---- attention output bias + residual + LayerNorm ----
        attn = attn + prow(pbase + 1, H)
        x = layer_norm(attn + x, prow(pbase + 2, H), prow(pbase + 3, H))

        # ---- feed-forward (gelu) + residual + LayerNorm ----
        ff = jnp.dot(x.astype(bf16), wrow(W1_OFF + l * H, H, I),
                     preferred_element_type=f32) + prow(pbase + 4, I)
        # TODO(synk): HF BERT default gelu is erf-based; tanh approximation used
        # here (matches the original BERT TF implementation).
        ff = 0.5 * ff * (1.0 + jnp.tanh(0.7978845608028654
                                        * (ff + 0.044715 * ff * ff * ff)))
        ff = jnp.dot(ff.astype(bf16), wrow(W2_OFF + l * I, I, H),
                     preferred_element_type=f32) + prow(pbase + 5, H)
        x = layer_norm(ff + x, prow(pbase + 6, H), prow(pbase + 7, H))

    # ---- pooler: tanh(W @ h_CLS + b) on the [CLS] row of each sequence ----
    cls = jnp.concatenate([x[b * SEQ:b * SEQ + 1, :] for b in range(BATCH)],
                          axis=0)                                   # (B, H)
    pooled = jnp.tanh(jnp.dot(cls.astype(bf16), wrow(POOLW_OFF, H, H),
                              preferred_element_type=f32) + prow(POOL_B_ROW, H))

    # ---- dropout(p=0.1): identity in eval mode ----
    # ---- classifier (lane-dense padded output) ----
    logits = jnp.dot(pooled.astype(bf16), wrow(CLSW_OFF, H, CLS_PAD),
                     preferred_element_type=f32) + prow(CLS_B_ROW, CLS_PAD)
    out_ref[...] = logits.astype(out_ref.dtype)


# ----------------------------- parameter init --------------------------------
def init_params(key):
    def nrm(k, shape, std=0.02):
        return (std * jax.random.normal(k, shape)).astype(jnp.float32)

    keys = iter(jax.random.split(key, 32))
    L, H, I = NUM_LAYERS, HIDDEN, INTERMEDIATE
    return {
        "word_emb": nrm(next(keys), (VOCAB, H)),
        "pos_emb": nrm(next(keys), (MAX_POS, H)),
        "type_emb": nrm(next(keys), (TYPE_VOCAB, H)),
        "emb_ln_g": jnp.ones((H,), jnp.float32),
        "emb_ln_b": jnp.zeros((H,), jnp.float32),
        "wqkv": nrm(next(keys), (L, H, 3 * H)),
        "bqkv": jnp.zeros((L, 3 * H), jnp.float32),
        "wo": nrm(next(keys), (L, H, H)),
        "bo": jnp.zeros((L, H), jnp.float32),
        "ln1_g": jnp.ones((L, H), jnp.float32),
        "ln1_b": jnp.zeros((L, H), jnp.float32),
        "w1": nrm(next(keys), (L, H, I)),
        "b1": jnp.zeros((L, I), jnp.float32),
        "w2": nrm(next(keys), (L, I, H)),
        "b2": jnp.zeros((L, H), jnp.float32),
        "ln2_g": jnp.ones((L, H), jnp.float32),
        "ln2_b": jnp.zeros((L, H), jnp.float32),
        "pooler_w": nrm(next(keys), (H, H)),
        "pooler_b": jnp.zeros((H,), jnp.float32),
        "cls_w": nrm(next(keys), (H, NUM_INTENTS)),
        "cls_b": jnp.zeros((NUM_INTENTS,), jnp.float32),
    }


def pack_params(params):
    """Pack weights/biases into two slabs ONCE (outside the jitted forward)."""
    H, I, L = HIDDEN, INTERMEDIATE, NUM_LAYERS

    w = jnp.zeros((W_ROWS, CLS_PAD), jnp.float32)
    for l in range(L):
        w = w.at[WQKV_OFF + l * H:WQKV_OFF + (l + 1) * H, :3 * H].set(params["wqkv"][l])
        w = w.at[WO_OFF + l * H:WO_OFF + (l + 1) * H, :H].set(params["wo"][l])
        w = w.at[W1_OFF + l * H:W1_OFF + (l + 1) * H, :I].set(params["w1"][l])
        w = w.at[W2_OFF + l * I:W2_OFF + (l + 1) * I, :H].set(params["w2"][l])
    w = w.at[POOLW_OFF:POOLW_OFF + H, :H].set(params["pooler_w"])
    w = w.at[CLSW_OFF:CLSW_OFF + H, :NUM_INTENTS].set(params["cls_w"])

    p = jnp.zeros((P_ROWS, CLS_PAD), jnp.float32)
    p = p.at[EMB_LN_G_ROW, :H].set(params["emb_ln_g"])
    p = p.at[EMB_LN_B_ROW, :H].set(params["emb_ln_b"])
    p = p.at[POOL_B_ROW, :H].set(params["pooler_b"])
    p = p.at[CLS_B_ROW, :NUM_INTENTS].set(params["cls_b"])
    for l in range(L):
        base = LAYER_P_BASE + l * LAYER_P_STRIDE
        p = p.at[base + 0, :3 * H].set(params["bqkv"][l])
        p = p.at[base + 1, :H].set(params["bo"][l])
        p = p.at[base + 2, :H].set(params["ln1_g"][l])
        p = p.at[base + 3, :H].set(params["ln1_b"][l])
        p = p.at[base + 4, :I].set(params["b1"][l])
        p = p.at[base + 5, :H].set(params["b2"][l])
        p = p.at[base + 6, :H].set(params["ln2_g"][l])
        p = p.at[base + 7, :H].set(params["ln2_b"][l])

    return {
        "word_emb": params["word_emb"],
        "pos_emb": params["pos_emb"],
        "type_emb": params["type_emb"],
        "w_slab": w.astype(jnp.bfloat16),   # bf16 cast precomputed once
        "p_slab": p,
    }


# ----------------------------- forward pass -----------------------------------
def intent_recognizer_forward(packed, input_ids, attention_mask):
    B, S = input_ids.shape
    H = HIDDEN

    # ---- embeddings (gather glue stays in JAX) ----
    positions = jnp.arange(S, dtype=jnp.int32)
    token_type = jnp.zeros((B, S), dtype=jnp.int32)
    emb = (jnp.take(packed["word_emb"], input_ids, axis=0)
           + jnp.take(packed["pos_emb"], positions, axis=0)[None, :, :]
           + jnp.take(packed["type_emb"], token_type, axis=0))
    emb2d = emb.reshape(B * S, H).astype(jnp.float32)

    # ---- combined additive attention bias: padding mask + cross-batch mask ----
    key_bias = ((1.0 - attention_mask.astype(jnp.float32)) * -1e9).reshape(1, B * S)
    batch_ids = jnp.repeat(jnp.arange(B), S)
    same_batch = batch_ids[:, None] == batch_ids[None, :]
    bias2d = jnp.where(same_batch,
                       jnp.broadcast_to(key_bias, (B * S, B * S)),
                       jnp.float32(-1e9))                           # (B*S, B*S)

    vmem_spec = pl.BlockSpec(memory_space=pltpu.MemorySpace.VMEM)
    logits_pad = pl.pallas_call(
        _fused_intent_kernel,
        out_shape=jax.ShapeDtypeStruct((B, CLS_PAD), jnp.float32),
        in_specs=[vmem_spec] * 4,
        out_specs=vmem_spec,
    )(emb2d, bias2d, packed["w_slab"], packed["p_slab"])

    return logits_pad[:, :NUM_INTENTS]


# ---------------------------------- main --------------------------------------
if __name__ == "__main__":
    key = jax.random.PRNGKey(0)
    k_param, k_ids = jax.random.split(key)

    params = init_params(k_param)
    packed = pack_params(params)   # slab packing + bf16 casts done once, not per call

    input_ids = jax.random.randint(k_ids, (BATCH, SEQ), 0, VOCAB, dtype=jnp.int32)
    attention_mask = jnp.ones((BATCH, SEQ), dtype=jnp.int32)
    attention_mask = attention_mask.at[1, SEQ - 2:].set(0)      # pad tail of example 1

    fwd = jax.jit(intent_recognizer_forward)
    logits = fwd(packed, input_ids, attention_mask)
    jax.block_until_ready(logits)
    assert logits.shape == (BATCH, NUM_INTENTS)
    assert bool(jnp.all(jnp.isfinite(logits)))
    print("KERNEL_OK")
</pallas_src>

<mosaic_0001>
module attributes {stable_mosaic.version = 11 : i64} {
  func.func @_fused_intent_kernel(%arg0: memref<16x32xf32, #tpu.memory_space<vmem>>, %arg1: memref<16x16xf32, #tpu.memory_space<vmem>>, %arg2: memref<384x128xbf16, #tpu.memory_space<vmem>>, %arg3: memref<20x128xf32, #tpu.memory_space<vmem>>, %arg4: memref<2x128xf32, #tpu.memory_space<vmem>>) attributes {dimension_semantics = [], scalar_prefetch = 0 : i64, scratch_operands = 0 : i64, tpu.core_type = #tpu.core_type<tc>} {
    %c0 = arith.constant 0 : index
    %c0_0 = arith.constant 0 : index
    %0 = vector.load %arg1[%c0, %c0_0] : memref<16x16xf32, #tpu.memory_space<vmem>>, vector<16x16xf32>
    %c0_1 = arith.constant 0 : index
    %c0_2 = arith.constant 0 : index
    %1 = vector.load %arg0[%c0_1, %c0_2] : memref<16x32xf32, #tpu.memory_space<vmem>>, vector<16x32xf32>
    %c0_3 = arith.constant 0 : index
    %c0_4 = arith.constant 0 : index
    %2 = vector.load %arg3[%c0_3, %c0_4] : memref<20x128xf32, #tpu.memory_space<vmem>>, vector<1x32xf32>
    %c1 = arith.constant 1 : index
    %c0_5 = arith.constant 0 : index
    %3 = vector.load %arg3[%c1, %c0_5] : memref<20x128xf32, #tpu.memory_space<vmem>>, vector<1x32xf32>
    %cst = arith.constant dense<0.000000e+00> : vector<16xf32>
    %4 = vector.multi_reduction <add>, %1, %cst [1] : vector<16x32xf32> to vector<16xf32>
    %5 = vector.shape_cast %4 : vector<16xf32> to vector<16x1xf32>
    %cst_6 = arith.constant 3.200000e+01 : f32
    %6 = vector.broadcast %cst_6 : f32 to vector<16x1xf32>
    %7 = arith.divf %5, %6 : vector<16x1xf32>
    %8 = vector.broadcast %7 : vector<16x1xf32> to vector<16x32xf32>
    %9 = arith.subf %1, %8 : vector<16x32xf32>
    %10 = arith.mulf %9, %9 : vector<16x32xf32>
    %cst_7 = arith.constant dense<0.000000e+00> : vector<16xf32>
    %11 = vector.multi_reduction <add>, %10, %cst_7 [1] : vector<16x32xf32> to vector<16xf32>
    %12 = vector.shape_cast %11 : vector<16xf32> to vector<16x1xf32>
    %cst_8 = arith.constant 3.200000e+01 : f32
    %13 = vector.broadcast %cst_8 : f32 to vector<16x1xf32>
    %14 = arith.divf %12, %13 : vector<16x1xf32>
    %15 = vector.broadcast %7 : vector<16x1xf32> to vector<16x32xf32>
    %16 = arith.subf %1, %15 : vector<16x32xf32>
    %cst_9 = arith.constant 9.99999996E-13 : f32
    %17 = vector.broadcast %cst_9 : f32 to vector<16x1xf32>
    %18 = arith.addf %14, %17 : vector<16x1xf32>
    %19 = math.rsqrt %18 : vector<16x1xf32>
    %20 = vector.broadcast %19 : vector<16x1xf32> to vector<16x32xf32>
    %21 = arith.mulf %16, %20 : vector<16x32xf32>
    %22 = vector.broadcast %2 : vector<1x32xf32> to vector<16x32xf32>
    %23 = arith.mulf %21, %22 : vector<16x32xf32>
    %24 = vector.broadcast %3 : vector<1x32xf32> to vector<16x32xf32>
    %25 = arith.addf %23, %24 : vector<16x32xf32>
    %26 = arith.truncf %25 : vector<16x32xf32> to vector<16x32xbf16>
    %c0_10 = arith.constant 0 : index
    %c0_11 = arith.constant 0 : index
    %27 = vector.load %arg2[%c0_10, %c0_11] : memref<384x128xbf16, #tpu.memory_space<vmem>>, vector<32x96xbf16>
    %cst_12 = arith.constant dense<0.000000e+00> : vector<16x96xf32>
    %28 = tpu.matmul %26, %27, %cst_12 {dimension_numbers = #tpu.dot_dimension_numbers<[1], [0], [0], [1], [0, 0, 1, 1], [], []>} : vector<16x32xbf16>, vector<32x96xbf16>, vector<16x96xf32> -> vector<16x96xf32>
    %c4 = arith.constant 4 : index
    %c0_13 = arith.constant 0 : index
    %29 = vector.load %arg3[%c4, %c0_13] : memref<20x128xf32, #tpu.memory_space<vmem>>, vector<1x96xf32>
    %30 = vector.broadcast %29 : vector<1x96xf32> to vector<16x96xf32>
    %31 = arith.addf %28, %30 : vector<16x96xf32>
    %32 = arith.truncf %31 : vector<16x96xf32> to vector<16x96xbf16>
    %cst_14 = arith.constant 0.000000e+00 : f32
    %33 = vector.broadcast %cst_14 : f32 to vector<16x32xf32>
    %34 = vector.extract_strided_slice %32 {offsets = [0, 0], sizes = [16, 8], strides = [1, 1]} : vector<16x96xbf16> to vector<16x8xbf16>
    %35 = vector.extract_strided_slice %32 {offsets = [0, 32], sizes = [16, 8], strides = [1, 1]} : vector<16x96xbf16> to vector<16x8xbf16>
    %36 = vector.extract_strided_slice %32 {offsets = [0, 64], sizes = [16, 8], strides = [1, 1]} : vector<16x96xbf16> to vector<16x8xbf16>
    %cst_15 = arith.constant dense<0.000000e+00> : vector<16x16xf32>
    %37 = tpu.matmul %34, %35, %cst_15 {dimension_numbers = #tpu.dot_dimension_numbers<[1], [1], [0], [0], [0, 0, 1, 0], [], []>} : vector<16x8xbf16>, vector<16x8xbf16>, vector<16x16xf32> -> vector<16x16xf32>
    %cst_16 = arith.constant 0.353553385 : f32
    %38 = vector.broadcast %cst_16 : f32 to vector<16x16xf32>
    %39 = arith.mulf %37, %38 : vector<16x16xf32>
    %40 = arith.addf %39, %0 : vector<16x16xf32>
    %cst_17 = arith.constant dense<0xFF800000> : vector<16xf32>
    %41 = vector.multi_reduction <maximumf>, %40, %cst_17 [1] : vector<16x16xf32> to vector<16xf32>
    %42 = vector.shape_cast %41 : vector<16xf32> to vector<16x1xf32>
    %43 = vector.broadcast %42 : vector<16x1xf32> to vector<16x16xf32>
    %44 = arith.subf %40, %43 : vector<16x16xf32>
    %45 = math.exp %44 : vector<16x16xf32>
    %cst_18 = arith.constant dense<0.000000e+00> : vector<16xf32>
    %46 = vector.multi_reduction <add>, %45, %cst_18 [1] : vector<16x16xf32> to vector<16xf32>
    %47 = vector.shape_cast %46 : vector<16xf32> to vector<16x1xf32>
    %48 = tpu.reciprocal %47 {approx = true} : vector<16x1xf32> -> vector<16x1xf32>
    %49 = vector.broadcast %48 : vector<16x1xf32> to vector<16x16xf32>
    %50 = arith.mulf %45, %49 : vector<16x16xf32>
    %51 = arith.truncf %50 : vector<16x16xf32> to vector<16x16xbf16>
    %cst_19 = arith.constant dense<0.000000e+00> : vector<16x8xf32>
    %52 = tpu.matmul %51, %36, %cst_19 {dimension_numbers = #tpu.dot_dimension_numbers<[1], [0], [0], [1], [0, 0, 1, 1], [], []>} : vector<16x16xbf16>, vector<16x8xbf16>, vector<16x8xf32> -> vector<16x8xf32>
    %c64 = arith.constant 64 : index
    %c0_20 = arith.constant 0 : index
    %53 = vector.load %arg2[%c64, %c0_20] : memref<384x128xbf16, #tpu.memory_space<vmem>>, vector<8x32xbf16>
    %54 = arith.truncf %52 : vector<16x8xf32> to vector<16x8xbf16>
    %cst_21 = arith.constant dense<0.000000e+00> : vector<16x32xf32>
    %55 = tpu.matmul %54, %53, %cst_21 {dimension_numbers = #tpu.dot_dimension_numbers<[1], [0], [0], [1], [0, 0, 1, 1], [], []>} : vector<16x8xbf16>, vector<8x32xbf16>, vector<16x32xf32> -> vector<16x32xf32>
    %56 = arith.addf %33, %55 : vector<16x32xf32>
    %57 = vector.extract_strided_slice %32 {offsets = [0, 8], sizes = [16, 8], strides = [1, 1]} : vector<16x96xbf16> to vector<16x8xbf16>
    %58 = vector.extract_strided_slice %32 {offsets = [0, 40], sizes = [16, 8], strides = [1, 1]} : vector<16x96xbf16> to vector<16x8xbf16>
    %59 = vector.extract_strided_slice %32 {offsets = [0, 72], sizes = [16, 8], strides = [1, 1]} : vector<16x96xbf16> to vector<16x8xbf16>
    %cst_22 = arith.constant dense<0.000000e+00> : vector<16x16xf32>
    %60 = tpu.matmul %57, %58, %cst_22 {dimension_numbers = #tpu.dot_dimension_numbers<[1], [1], [0], [0], [0, 0, 1, 0], [], []>} : vector<16x8xbf16>, vector<16x8xbf16>, vector<16x16xf32> -> vector<16x16xf32>
    %cst_23 = arith.constant 0.353553385 : f32
    %61 = vector.broadcast %cst_23 : f32 to vector<16x16xf32>
    %62 = arith.mulf %60, %61 : vector<16x16xf32>
    %63 = arith.addf %62, %0 : vector<16x16xf32>
    %cst_24 = arith.constant dense<0xFF800000> : vector<16xf32>
    %64 = vector.multi_reduction <maximumf>, %63, %cst_24 [1] : vector<16x16xf32> to vector<16xf32>
    %65 = vector.shape_cast %64 : vector<16xf32> to vector<16x1xf32>
    %66 = vector.broadcast %65 : vector<16x1xf32> to vector<16x16xf32>
    %67 = arith.subf %63, %66 : vector<16x16xf32>
    %68 = math.exp %67 : vector<16x16xf32>
    %cst_25 = arith.constant dense<0.000000e+00> : vector<16xf32>
    %69 = vector.multi_reduction <add>, %68, %cst_25 [1] : vector<16x16xf32> to vector<16xf32>
    %70 = vector.shape_cast %69 : vector<16xf32> to vector<16x1xf32>
    %71 = tpu.reciprocal %70 {approx = true} : vector<16x1xf32> -> vector<16x1xf32>
    %72 = vector.broadcast %71 : vector<16x1xf32> to vector<16x16xf32>
    %73 = arith.mulf %68, %72 : vector<16x16xf32>
    %74 = arith.truncf %73 : vector<16x16xf32> to vector<16x16xbf16>
    %cst_26 = arith.constant dense<0.000000e+00> : vector<16x8xf32>
    %75 = tpu.matmul %74, %59, %cst_26 {dimension_numbers = #tpu.dot_dimension_numbers<[1], [0], [0], [1], [0, 0, 1, 1], [], []>} : vector<16x16xbf16>, vector<16x8xbf16>, vector<16x8xf32> -> vector<16x8xf32>
    %c72 = arith.constant 72 : index
    %c0_27 = arith.constant 0 : index
    %76 = vector.load %arg2[%c72, %c0_27] : memref<384x128xbf16, #tpu.memory_space<vmem>>, vector<8x32xbf16>
    %77 = arith.truncf %75 : vector<16x8xf32> to vector<16x8xbf16>
    %cst_28 = arith.constant dense<0.000000e+00> : vector<16x32xf32>
    %78 = tpu.matmul %77, %76, %cst_28 {dimension_numbers = #tpu.dot_dimension_numbers<[1], [0], [0], [1], [0, 0, 1, 1], [], []>} : vector<16x8xbf16>, vector<8x32xbf16>, vector<16x32xf32> -> vector<16x32xf32>
    %79 = arith.addf %56, %78 : vector<16x32xf32>
    %80 = vector.extract_strided_slice %32 {offsets = [0, 16], sizes = [16, 8], strides = [1, 1]} : vector<16x96xbf16> to vector<16x8xbf16>
    %81 = vector.extract_strided_slice %32 {offsets = [0, 48], sizes = [16, 8], strides = [1, 1]} : vector<16x96xbf16> to vector<16x8xbf16>
    %82 = vector.extract_strided_slice %32 {offsets = [0, 80], sizes = [16, 8], strides = [1, 1]} : vector<16x96xbf16> to vector<16x8xbf16>
    %cst_29 = arith.constant dense<0.000000e+00> : vector<16x16xf32>
    %83 = tpu.matmul %80, %81, %cst_29 {dimension_numbers = #tpu.dot_dimension_numbers<[1], [1], [0], [0], [0, 0, 1, 0], [], []>} : vector<16x8xbf16>, vector<16x8xbf16>, vector<16x16xf32> -> vector<16x16xf32>
    %cst_30 = arith.constant 0.353553385 : f32
    %84 = vector.broadcast %cst_30 : f32 to vector<16x16xf32>
    %85 = arith.mulf %83, %84 : vector<16x16xf32>
    %86 = arith.addf %85, %0 : vector<16x16xf32>
    %cst_31 = arith.constant dense<0xFF800000> : vector<16xf32>
    %87 = vector.multi_reduction <maximumf>, %86, %cst_31 [1] : vector<16x16xf32> to vector<16xf32>
    %88 = vector.shape_cast %87 : vector<16xf32> to vector<16x1xf32>
    %89 = vector.broadcast %88 : vector<16x1xf32> to vector<16x16xf32>
    %90 = arith.subf %86, %89 : vector<16x16xf32>
    %91 = math.exp %90 : vector<16x16xf32>
    %cst_32 = arith.constant dense<0.000000e+00> : vector<16xf32>
    %92 = vector.multi_reduction <add>, %91, %cst_32 [1] : vector<16x16xf32> to vector<16xf32>
    %93 = vector.shape_cast %92 : vector<16xf32> to vector<16x1xf32>
    %94 = tpu.reciprocal %93 {approx = true} : vector<16x1xf32> -> vector<16x1xf32>
    %95 = vector.broadcast %94 : vector<16x1xf32> to vector<16x16xf32>
    %96 = arith.mulf %91, %95 : vector<16x16xf32>
    %97 = arith.truncf %96 : vector<16x16xf32> to vector<16x16xbf16>
    %cst_33 = arith.constant dense<0.000000e+00> : vector<16x8xf32>
    %98 = tpu.matmul %97, %82, %cst_33 {dimension_numbers = #tpu.dot_dimension_numbers<[1], [0], [0], [1], [0, 0, 1, 1], [], []>} : vector<16x16xbf16>, vector<16x8xbf16>, vector<16x8xf32> -> vector<16x8xf32>
    %c80 = arith.constant 80 : index
    %c0_34 = arith.constant 0 : index
    %99 = vector.load %arg2[%c80, %c0_34] : memref<384x128xbf16, #tpu.memory_space<vmem>>, vector<8x32xbf16>
    %100 = arith.truncf %98 : vector<16x8xf32> to vector<16x8xbf16>
    %cst_35 = arith.constant dense<0.000000e+00> : vector<16x32xf32>
    %101 = tpu.matmul %100, %99, %cst_35 {dimension_numbers = #tpu.dot_dimension_numbers<[1], [0], [0], [1], [0, 0, 1, 1], [], []>} : vector<16x8xbf16>, vector<8x32xbf16>, vector<16x32xf32> -> vector<16x32xf32>
    %102 = arith.addf %79, %101 : vector<16x32xf32>
    %103 = vector.extract_strided_slice %32 {offsets = [0, 24], sizes = [16, 8], strides = [1, 1]} : vector<16x96xbf16> to vector<16x8xbf16>
    %104 = vector.extract_strided_slice %32 {offsets = [0, 56], sizes = [16, 8], strides = [1, 1]} : vector<16x96xbf16> to vector<16x8xbf16>
    %105 = vector.extract_strided_slice %32 {offsets = [0, 88], sizes = [16, 8], strides = [1, 1]} : vector<16x96xbf16> to vector<16x8xbf16>
    %cst_36 = arith.constant dense<0.000000e+00> : vector<16x16xf32>
    %106 = tpu.matmul %103, %104, %cst_36 {dimension_numbers = #tpu.dot_dimension_numbers<[1], [1], [0], [0], [0, 0, 1, 0], [], []>} : vector<16x8xbf16>, vector<16x8xbf16>, vector<16x16xf32> -> vector<16x16xf32>
    %cst_37 = arith.constant 0.353553385 : f32
    %107 = vector.broadcast %cst_37 : f32 to vector<16x16xf32>
    %108 = arith.mulf %106, %107 : vector<16x16xf32>
    %109 = arith.addf %108, %0 : vector<16x16xf32>
    %cst_38 = arith.constant dense<0xFF800000> : vector<16xf32>
    %110 = vector.multi_reduction <maximumf>, %109, %cst_38 [1] : vector<16x16xf32> to vector<16xf32>
    %111 = vector.shape_cast %110 : vector<16xf32> to vector<16x1xf32>
    %112 = vector.broadcast %111 : vector<16x1xf32> to vector<16x16xf32>
    %113 = arith.subf %109, %112 : vector<16x16xf32>
    %114 = math.exp %113 : vector<16x16xf32>
    %cst_39 = arith.constant dense<0.000000e+00> : vector<16xf32>
    %115 = vector.multi_reduction <add>, %114, %cst_39 [1] : vector<16x16xf32> to vector<16xf32>
    %116 = vector.shape_cast %115 : vector<16xf32> to vector<16x1xf32>
    %117 = tpu.reciprocal %116 {approx = true} : vector<16x1xf32> -> vector<16x1xf32>
    %118 = vector.broadcast %117 : vector<16x1xf32> to vector<16x16xf32>
    %119 = arith.mulf %114, %118 : vector<16x16xf32>
    %120 = arith.truncf %119 : vector<16x16xf32> to vector<16x16xbf16>
    %cst_40 = arith.constant dense<0.000000e+00> : vector<16x8xf32>
    %121 = tpu.matmul %120, %105, %cst_40 {dimension_numbers = #tpu.dot_dimension_numbers<[1], [0], [0], [1], [0, 0, 1, 1], [], []>} : vector<16x16xbf16>, vector<16x8xbf16>, vector<16x8xf32> -> vector<16x8xf32>
    %c88 = arith.constant 88 : index
    %c0_41 = arith.constant 0 : index
    %122 = vector.load %arg2[%c88, %c0_41] : memref<384x128xbf16, #tpu.memory_space<vmem>>, vector<8x32xbf16>
    %123 = arith.truncf %121 : vector<16x8xf32> to vector<16x8xbf16>
    %cst_42 = arith.constant dense<0.000000e+00> : vector<16x32xf32>
    %124 = tpu.matmul %123, %122, %cst_42 {dimension_numbers = #tpu.dot_dimension_numbers<[1], [0], [0], [1], [0, 0, 1, 1], [], []>} : vector<16x8xbf16>, vector<8x32xbf16>, vector<16x32xf32> -> vector<16x32xf32>
    %125 = arith.addf %102, %124 : vector<16x32xf32>
    %c5 = arith.constant 5 : index
    %c0_43 = arith.constant 0 : index
    %126 = vector.load %arg3[%c5, %c0_43] : memref<20x128xf32, #tpu.memory_space<vmem>>, vector<1x32xf32>
    %127 = vector.broadcast %126 : vector<1x32xf32> to vector<16x32xf32>
    %128 = arith.addf %125, %127 : vector<16x32xf32>
    %129 = arith.addf %128, %25 : vector<16x32xf32>
    %c6 = arith.constant 6 : index
    %c0_44 = arith.constant 0 : index
    %130 = vector.load %arg3[%c6, %c0_44] : memref<20x128xf32, #tpu.memory_space<vmem>>, vector<1x32xf32>
    %c7 = arith.constant 7 : index
    %c0_45 = arith.constant 0 : index
    %131 = vector.load %arg3[%c7, %c0_45] : memref<20x128xf32, #tpu.memory_space<vmem>>, vector<1x32xf32>
    %cst_46 = arith.constant dense<0.000000e+00> : vector<16xf32>
    %132 = vector.multi_reduction <add>, %129, %cst_46 [1] : vector<16x32xf32> to vector<16xf32>
    %133 = vector.shape_cast %132 : vector<16xf32> to vector<16x1xf32>
    %cst_47 = arith.constant 3.200000e+01 : f32
    %134 = vector.broadcast %cst_47 : f32 to vector<16x1xf32>
    %135 = arith.divf %133, %134 : vector<16x1xf32>
    %136 = vector.broadcast %135 : vector<16x1xf32> to vector<16x32xf32>
    %137 = arith.subf %129, %136 : vector<16x32xf32>
    %138 = arith.mulf %137, %137 : vector<16x32xf32>
    %cst_48 = arith.constant dense<0.000000e+00> : vector<16xf32>
    %139 = vector.multi_reduction <add>, %138, %cst_48 [1] : vector<16x32xf32> to vector<16xf32>
    %140 = vector.shape_cast %139 : vector<16xf32> to vector<16x1xf32>
    %cst_49 = arith.constant 3.200000e+01 : f32
    %141 = vector.broadcast %cst_49 : f32 to vector<16x1xf32>
    %142 = arith.divf %140, %141 : vector<16x1xf32>
    %143 = vector.broadcast %135 : vector<16x1xf32> to vector<16x32xf32>
    %144 = arith.subf %129, %143 : vector<16x32xf32>
    %cst_50 = arith.constant 9.99999996E-13 : f32
    %145 = vector.broadcast %cst_50 : f32 to vector<16x1xf32>
    %146 = arith.addf %142, %145 : vector<16x1xf32>
    %147 = math.rsqrt %146 : vector<16x1xf32>
    %148 = vector.broadcast %147 : vector<16x1xf32> to vector<16x32xf32>
    %149 = arith.mulf %144, %148 : vector<16x32xf32>
    %150 = vector.broadcast %130 : vector<1x32xf32> to vector<16x32xf32>
    %151 = arith.mulf %149, %150 : vector<16x32xf32>
    %152 = vector.broadcast %131 : vector<1x32xf32> to vector<16x32xf32>
    %153 = arith.addf %151, %152 : vector<16x32xf32>
    %154 = arith.truncf %153 : vector<16x32xf32> to vector<16x32xbf16>
    %c128 = arith.constant 128 : index
    %c0_51 = arith.constant 0 : index
    %155 = vector.load %arg2[%c128, %c0_51] : memref<384x128xbf16, #tpu.memory_space<vmem>>, vector<32x64xbf16>
    %cst_52 = arith.constant dense<0.000000e+00> : vector<16x64xf32>
    %156 = tpu.matmul %154, %155, %cst_52 {dimension_numbers = #tpu.dot_dimension_numbers<[1], [0], [0], [1], [0, 0, 1, 1], [], []>} : vector<16x32xbf16>, vector<32x64xbf16>, vector<16x64xf32> -> vector<16x64xf32>
    %c8 = arith.constant 8 : index
    %c0_53 = arith.constant 0 : index
    %157 = vector.load %arg3[%c8, %c0_53] : memref<20x128xf32, #tpu.memory_space<vmem>>, vector<1x64xf32>
    %158 = vector.broadcast %157 : vector<1x64xf32> to vector<16x64xf32>
    %159 = arith.addf %156, %158 : vector<16x64xf32>
    %cst_54 = arith.constant 5.000000e-01 : f32
    %160 = vector.broadcast %cst_54 : f32 to vector<16x64xf32>
    %161 = arith.mulf %160, %159 : vector<16x64xf32>
    %cst_55 = arith.constant 4.471500e-02 : f32
    %162 = vector.broadcast %cst_55 : f32 to vector<16x64xf32>
    %163 = arith.mulf %162, %159 : vector<16x64xf32>
    %164 = arith.mulf %163, %159 : vector<16x64xf32>
    %165 = arith.mulf %164, %159 : vector<16x64xf32>
    %166 = arith.addf %159, %165 : vector<16x64xf32>
    %cst_56 = arith.constant 0.797884583 : f32
    %167 = vector.broadcast %cst_56 : f32 to vector<16x64xf32>
    %168 = arith.mulf %167, %166 : vector<16x64xf32>
    %169 = math.tanh %168 : vector<16x64xf32>
    %cst_57 = arith.constant 1.000000e+00 : f32
    %170 = vector.broadcast %cst_57 : f32 to vector<16x64xf32>
    %171 = arith.addf %170, %169 : vector<16x64xf32>
    %172 = arith.mulf %161, %171 : vector<16x64xf32>
    %173 = arith.truncf %172 : vector<16x64xf32> to vector<16x64xbf16>
    %c192 = arith.constant 192 : index
    %c0_58 = arith.constant 0 : index
    %174 = vector.load %arg2[%c192, %c0_58] : memref<384x128xbf16, #tpu.memory_space<vmem>>, vector<64x32xbf16>
    %cst_59 = arith.constant dense<0.000000e+00> : vector<16x32xf32>
    %175 = tpu.matmul %173, %174, %cst_59 {dimension_numbers = #tpu.dot_dimension_numbers<[1], [0], [0], [1], [0, 0, 1, 1], [], []>} : vector<16x64xbf16>, vector<64x32xbf16>, vector<16x32xf32> -> vector<16x32xf32>
    %c9 = arith.constant 9 : index
    %c0_60 = arith.constant 0 : index
    %176 = vector.load %arg3[%c9, %c0_60] : memref<20x128xf32, #tpu.memory_space<vmem>>, vector<1x32xf32>
    %177 = vector.broadcast %176 : vector<1x32xf32> to vector<16x32xf32>
    %178 = arith.addf %175, %177 : vector<16x32xf32>
    %179 = arith.addf %178, %153 : vector<16x32xf32>
    %c10 = arith.constant 10 : index
    %c0_61 = arith.constant 0 : index
    %180 = vector.load %arg3[%c10, %c0_61] : memref<20x128xf32, #tpu.memory_space<vmem>>, vector<1x32xf32>
    %c11 = arith.constant 11 : index
    %c0_62 = arith.constant 0 : index
    %181 = vector.load %arg3[%c11, %c0_62] : memref<20x128xf32, #tpu.memory_space<vmem>>, vector<1x32xf32>
    %cst_63 = arith.constant dense<0.000000e+00> : vector<16xf32>
    %182 = vector.multi_reduction <add>, %179, %cst_63 [1] : vector<16x32xf32> to vector<16xf32>
    %183 = vector.shape_cast %182 : vector<16xf32> to vector<16x1xf32>
    %cst_64 = arith.constant 3.200000e+01 : f32
    %184 = vector.broadcast %cst_64 : f32 to vector<16x1xf32>
    %185 = arith.divf %183, %184 : vector<16x1xf32>
    %186 = vector.broadcast %185 : vector<16x1xf32> to vector<16x32xf32>
    %187 = arith.subf %179, %186 : vector<16x32xf32>
    %188 = arith.mulf %187, %187 : vector<16x32xf32>
    %cst_65 = arith.constant dense<0.000000e+00> : vector<16xf32>
    %189 = vector.multi_reduction <add>, %188, %cst_65 [1] : vector<16x32xf32> to vector<16xf32>
    %190 = vector.shape_cast %189 : vector<16xf32> to vector<16x1xf32>
    %cst_66 = arith.constant 3.200000e+01 : f32
    %191 = vector.broadcast %cst_66 : f32 to vector<16x1xf32>
    %192 = arith.divf %190, %191 : vector<16x1xf32>
    %193 = vector.broadcast %185 : vector<16x1xf32> to vector<16x32xf32>
    %194 = arith.subf %179, %193 : vector<16x32xf32>
    %cst_67 = arith.constant 9.99999996E-13 : f32
    %195 = vector.broadcast %cst_67 : f32 to vector<16x1xf32>
    %196 = arith.addf %192, %195 : vector<16x1xf32>
    %197 = math.rsqrt %196 : vector<16x1xf32>
    %198 = vector.broadcast %197 : vector<16x1xf32> to vector<16x32xf32>
    %199 = arith.mulf %194, %198 : vector<16x32xf32>
    %200 = vector.broadcast %180 : vector<1x32xf32> to vector<16x32xf32>
    %201 = arith.mulf %199, %200 : vector<16x32xf32>
    %202 = vector.broadcast %181 : vector<1x32xf32> to vector<16x32xf32>
    %203 = arith.addf %201, %202 : vector<16x32xf32>
    %204 = arith.truncf %203 : vector<16x32xf32> to vector<16x32xbf16>
    %c32 = arith.constant 32 : index
    %c0_68 = arith.constant 0 : index
    %205 = vector.load %arg2[%c32, %c0_68] : memref<384x128xbf16, #tpu.memory_space<vmem>>, vector<32x96xbf16>
    %cst_69 = arith.constant dense<0.000000e+00> : vector<16x96xf32>
    %206 = tpu.matmul %204, %205, %cst_69 {dimension_numbers = #tpu.dot_dimension_numbers<[1], [0], [0], [1], [0, 0, 1, 1], [], []>} : vector<16x32xbf16>, vector<32x96xbf16>, vector<16x96xf32> -> vector<16x96xf32>
    %c12 = arith.constant 12 : index
    %c0_70 = arith.constant 0 : index
    %207 = vector.load %arg3[%c12, %c0_70] : memref<20x128xf32, #tpu.memory_space<vmem>>, vector<1x96xf32>
    %208 = vector.broadcast %207 : vector<1x96xf32> to vector<16x96xf32>
    %209 = arith.addf %206, %208 : vector<16x96xf32>
    %210 = arith.truncf %209 : vector<16x96xf32> to vector<16x96xbf16>
    %cst_71 = arith.constant 0.000000e+00 : f32
    %211 = vector.broadcast %cst_71 : f32 to vector<16x32xf32>
    %212 = vector.extract_strided_slice %210 {offsets = [0, 0], sizes = [16, 8], strides = [1, 1]} : vector<16x96xbf16> to vector<16x8xbf16>
    %213 = vector.extract_strided_slice %210 {offsets = [0, 32], sizes = [16, 8], strides = [1, 1]} : vector<16x96xbf16> to vector<16x8xbf16>
    %214 = vector.extract_strided_slice %210 {offsets = [0, 64], sizes = [16, 8], strides = [1, 1]} : vector<16x96xbf16> to vector<16x8xbf16>
    %cst_72 = arith.constant dense<0.000000e+00> : vector<16x16xf32>
    %215 = tpu.matmul %212, %213, %cst_72 {dimension_numbers = #tpu.dot_dimension_numbers<[1], [1], [0], [0], [0, 0, 1, 0], [], []>} : vector<16x8xbf16>, vector<16x8xbf16>, vector<16x16xf32> -> vector<16x16xf32>
    %cst_73 = arith.constant 0.353553385 : f32
    %216 = vector.broadcast %cst_73 : f32 to vector<16x16xf32>
    %217 = arith.mulf %215, %216 : vector<16x16xf32>
    %218 = arith.addf %217, %0 : vector<16x16xf32>
    %cst_74 = arith.constant dense<0xFF800000> : vector<16xf32>
    %219 = vector.multi_reduction <maximumf>, %218, %cst_74 [1] : vector<16x16xf32> to vector<16xf32>
    %220 = vector.shape_cast %219 : vector<16xf32> to vector<16x1xf32>
    %221 = vector.broadcast %220 : vector<16x1xf32> to vector<16x16xf32>
    %222 = arith.subf %218, %221 : vector<16x16xf32>
    %223 = math.exp %222 : vector<16x16xf32>
    %cst_75 = arith.constant dense<0.000000e+00> : vector<16xf32>
    %224 = vector.multi_reduction <add>, %223, %cst_75 [1] : vector<16x16xf32> to vector<16xf32>
    %225 = vector.shape_cast %224 : vector<16xf32> to vector<16x1xf32>
    %226 = tpu.reciprocal %225 {approx = true} : vector<16x1xf32> -> vector<16x1xf32>
    %227 = vector.broadcast %226 : vector<16x1xf32> to vector<16x16xf32>
    %228 = arith.mulf %223, %227 : vector<16x16xf32>
    %229 = arith.truncf %228 : vector<16x16xf32> to vector<16x16xbf16>
    %cst_76 = arith.constant dense<0.000000e+00> : vector<16x8xf32>
    %230 = tpu.matmul %229, %214, %cst_76 {dimension_numbers = #tpu.dot_dimension_numbers<[1], [0], [0], [1], [0, 0, 1, 1], [], []>} : vector<16x16xbf16>, vector<16x8xbf16>, vector<16x8xf32> -> vector<16x8xf32>
    %c96 = arith.constant 96 : index
    %c0_77 = arith.constant 0 : index
    %231 = vector.load %arg2[%c96, %c0_77] : memref<384x128xbf16, #tpu.memory_space<vmem>>, vector<8x32xbf16>
    %232 = arith.truncf %230 : vector<16x8xf32> to vector<16x8xbf16>
    %cst_78 = arith.constant dense<0.000000e+00> : vector<16x32xf32>
    %233 = tpu.matmul %232, %231, %cst_78 {dimension_numbers = #tpu.dot_dimension_numbers<[1], [0], [0], [1], [0, 0, 1, 1], [], []>} : vector<16x8xbf16>, vector<8x32xbf16>, vector<16x32xf32> -> vector<16x32xf32>
    %234 = arith.addf %211, %233 : vector<16x32xf32>
    %235 = vector.extract_strided_slice %210 {offsets = [0, 8], sizes = [16, 8], strides = [1, 1]} : vector<16x96xbf16> to vector<16x8xbf16>
    %236 = vector.extract_strided_slice %210 {offsets = [0, 40], sizes = [16, 8], strides = [1, 1]} : vector<16x96xbf16> to vector<16x8xbf16>
    %237 = vector.extract_strided_slice %210 {offsets = [0, 72], sizes = [16, 8], strides = [1, 1]} : vector<16x96xbf16> to vector<16x8xbf16>
    %cst_79 = arith.constant dense<0.000000e+00> : vector<16x16xf32>
    %238 = tpu.matmul %235, %236, %cst_79 {dimension_numbers = #tpu.dot_dimension_numbers<[1], [1], [0], [0], [0, 0, 1, 0], [], []>} : vector<16x8xbf16>, vector<16x8xbf16>, vector<16x16xf32> -> vector<16x16xf32>
    %cst_80 = arith.constant 0.353553385 : f32
    %239 = vector.broadcast %cst_80 : f32 to vector<16x16xf32>
    %240 = arith.mulf %238, %239 : vector<16x16xf32>
    %241 = arith.addf %240, %0 : vector<16x16xf32>
    %cst_81 = arith.constant dense<0xFF800000> : vector<16xf32>
    %242 = vector.multi_reduction <maximumf>, %241, %cst_81 [1] : vector<16x16xf32> to vector<16xf32>
    %243 = vector.shape_cast %242 : vector<16xf32> to vector<16x1xf32>
    %244 = vector.broadcast %243 : vector<16x1xf32> to vector<16x16xf32>
    %245 = arith.subf %241, %244 : vector<16x16xf32>
    %246 = math.exp %245 : vector<16x16xf32>
    %cst_82 = arith.constant dense<0.000000e+00> : vector<16xf32>
    %247 = vector.multi_reduction <add>, %246, %cst_82 [1] : vector<16x16xf32> to vector<16xf32>
    %248 = vector.shape_cast %247 : vector<16xf32> to vector<16x1xf32>
    %249 = tpu.reciprocal %248 {approx = true} : vector<16x1xf32> -> vector<16x1xf32>
    %250 = vector.broadcast %249 : vector<16x1xf32> to vector<16x16xf32>
    %251 = arith.mulf %246, %250 : vector<16x16xf32>
    %252 = arith.truncf %251 : vector<16x16xf32> to vector<16x16xbf16>
    %cst_83 = arith.constant dense<0.000000e+00> : vector<16x8xf32>
    %253 = tpu.matmul %252, %237, %cst_83 {dimension_numbers = #tpu.dot_dimension_numbers<[1], [0], [0], [1], [0, 0, 1, 1], [], []>} : vector<16x16xbf16>, vector<16x8xbf16>, vector<16x8xf32> -> vector<16x8xf32>
    %c104 = arith.constant 104 : index
    %c0_84 = arith.constant 0 : index
    %254 = vector.load %arg2[%c104, %c0_84] : memref<384x128xbf16, #tpu.memory_space<vmem>>, vector<8x32xbf16>
    %255 = arith.truncf %253 : vector<16x8xf32> to vector<16x8xbf16>
    %cst_85 = arith.constant dense<0.000000e+00> : vector<16x32xf32>
    %256 = tpu.matmul %255, %254, %cst_85 {dimension_numbers = #tpu.dot_dimension_numbers<[1], [0], [0], [1], [0, 0, 1, 1], [], []>} : vector<16x8xbf16>, vector<8x32xbf16>, vector<16x32xf32> -> vector<16x32xf32>
    %257 = arith.addf %234, %256 : vector<16x32xf32>
    %258 = vector.extract_strided_slice %210 {offsets = [0, 16], sizes = [16, 8], strides = [1, 1]} : vector<16x96xbf16> to vector<16x8xbf16>
    %259 = vector.extract_strided_slice %210 {offsets = [0, 48], sizes = [16, 8], strides = [1, 1]} : vector<16x96xbf16> to vector<16x8xbf16>
    %260 = vector.extract_strided_slice %210 {offsets = [0, 80], sizes = [16, 8], strides = [1, 1]} : vector<16x96xbf16> to vector<16x8xbf16>
    %cst_86 = arith.constant dense<0.000000e+00> : vector<16x16xf32>
    %261 = tpu.matmul %258, %259, %cst_86 {dimension_numbers = #tpu.dot_dimension_numbers<[1], [1], [0], [0], [0, 0, 1, 0], [], []>} : vector<16x8xbf16>, vector<16x8xbf16>, vector<16x16xf32> -> vector<16x16xf32>
    %cst_87 = arith.constant 0.353553385 : f32
    %262 = vector.broadcast %cst_87 : f32 to vector<16x16xf32>
    %263 = arith.mulf %261, %262 : vector<16x16xf32>
    %264 = arith.addf %263, %0 : vector<16x16xf32>
    %cst_88 = arith.constant dense<0xFF800000> : vector<16xf32>
    %265 = vector.multi_reduction <maximumf>, %264, %cst_88 [1] : vector<16x16xf32> to vector<16xf32>
    %266 = vector.shape_cast %265 : vector<16xf32> to vector<16x1xf32>
    %267 = vector.broadcast %266 : vector<16x1xf32> to vector<16x16xf32>
    %268 = arith.subf %264, %267 : vector<16x16xf32>
    %269 = math.exp %268 : vector<16x16xf32>
    %cst_89 = arith.constant dense<0.000000e+00> : vector<16xf32>
    %270 = vector.multi_reduction <add>, %269, %cst_89 [1] : vector<16x16xf32> to vector<16xf32>
    %271 = vector.shape_cast %270 : vector<16xf32> to vector<16x1xf32>
    %272 = tpu.reciprocal %271 {approx = true} : vector<16x1xf32> -> vector<16x1xf32>
    %273 = vector.broadcast %272 : vector<16x1xf32> to vector<16x16xf32>
    %274 = arith.mulf %269, %273 : vector<16x16xf32>
    %275 = arith.truncf %274 : vector<16x16xf32> to vector<16x16xbf16>
    %cst_90 = arith.constant dense<0.000000e+00> : vector<16x8xf32>
    %276 = tpu.matmul %275, %260, %cst_90 {dimension_numbers = #tpu.dot_dimension_numbers<[1], [0], [0], [1], [0, 0, 1, 1], [], []>} : vector<16x16xbf16>, vector<16x8xbf16>, vector<16x8xf32> -> vector<16x8xf32>
    %c112 = arith.constant 112 : index
    %c0_91 = arith.constant 0 : index
    %277 = vector.load %arg2[%c112, %c0_91] : memref<384x128xbf16, #tpu.memory_space<vmem>>, vector<8x32xbf16>
    %278 = arith.truncf %276 : vector<16x8xf32> to vector<16x8xbf16>
    %cst_92 = arith.constant dense<0.000000e+00> : vector<16x32xf32>
    %279 = tpu.matmul %278, %277, %cst_92 {dimension_numbers = #tpu.dot_dimension_numbers<[1], [0], [0], [1], [0, 0, 1, 1], [], []>} : vector<16x8xbf16>, vector<8x32xbf16>, vector<16x32xf32> -> vector<16x32xf32>
    %280 = arith.addf %257, %279 : vector<16x32xf32>
    %281 = vector.extract_strided_slice %210 {offsets = [0, 24], sizes = [16, 8], strides = [1, 1]} : vector<16x96xbf16> to vector<16x8xbf16>
    %282 = vector.extract_strided_slice %210 {offsets = [0, 56], sizes = [16, 8], strides = [1, 1]} : vector<16x96xbf16> to vector<16x8xbf16>
    %283 = vector.extract_strided_slice %210 {offsets = [0, 88], sizes = [16, 8], strides = [1, 1]} : vector<16x96xbf16> to vector<16x8xbf16>
    %cst_93 = arith.constant dense<0.000000e+00> : vector<16x16xf32>
    %284 = tpu.matmul %281, %282, %cst_93 {dimension_numbers = #tpu.dot_dimension_numbers<[1], [1], [0], [0], [0, 0, 1, 0], [], []>} : vector<16x8xbf16>, vector<16x8xbf16>, vector<16x16xf32> -> vector<16x16xf32>
    %cst_94 = arith.constant 0.353553385 : f32
    %285 = vector.broadcast %cst_94 : f32 to vector<16x16xf32>
    %286 = arith.mulf %284, %285 : vector<16x16xf32>
    %287 = arith.addf %286, %0 : vector<16x16xf32>
    %cst_95 = arith.constant dense<0xFF800000> : vector<16xf32>
    %288 = vector.multi_reduction <maximumf>, %287, %cst_95 [1] : vector<16x16xf32> to vector<16xf32>
    %289 = vector.shape_cast %288 : vector<16xf32> to vector<16x1xf32>
    %290 = vector.broadcast %289 : vector<16x1xf32> to vector<16x16xf32>
    %291 = arith.subf %287, %290 : vector<16x16xf32>
    %292 = math.exp %291 : vector<16x16xf32>
    %cst_96 = arith.constant dense<0.000000e+00> : vector<16xf32>
    %293 = vector.multi_reduction <add>, %292, %cst_96 [1] : vector<16x16xf32> to vector<16xf32>
    %294 = vector.shape_cast %293 : vector<16xf32> to vector<16x1xf32>
    %295 = tpu.reciprocal %294 {approx = true} : vector<16x1xf32> -> vector<16x1xf32>
    %296 = vector.broadcast %295 : vector<16x1xf32> to vector<16x16xf32>
    %297 = arith.mulf %292, %296 : vector<16x16xf32>
    %298 = arith.truncf %297 : vector<16x16xf32> to vector<16x16xbf16>
    %cst_97 = arith.constant dense<0.000000e+00> : vector<16x8xf32>
    %299 = tpu.matmul %298, %283, %cst_97 {dimension_numbers = #tpu.dot_dimension_numbers<[1], [0], [0], [1], [0, 0, 1, 1], [], []>} : vector<16x16xbf16>, vector<16x8xbf16>, vector<16x8xf32> -> vector<16x8xf32>
    %c120 = arith.constant 120 : index
    %c0_98 = arith.constant 0 : index
    %300 = vector.load %arg2[%c120, %c0_98] : memref<384x128xbf16, #tpu.memory_space<vmem>>, vector<8x32xbf16>
    %301 = arith.truncf %299 : vector<16x8xf32> to vector<16x8xbf16>
    %cst_99 = arith.constant dense<0.000000e+00> : vector<16x32xf32>
    %302 = tpu.matmul %301, %300, %cst_99 {dimension_numbers = #tpu.dot_dimension_numbers<[1], [0], [0], [1], [0, 0, 1, 1], [], []>} : vector<16x8xbf16>, vector<8x32xbf16>, vector<16x32xf32> -> vector<16x32xf32>
    %303 = arith.addf %280, %302 : vector<16x32xf32>
    %c13 = arith.constant 13 : index
    %c0_100 = arith.constant 0 : index
    %304 = vector.load %arg3[%c13, %c0_100] : memref<20x128xf32, #tpu.memory_space<vmem>>, vector<1x32xf32>
    %305 = vector.broadcast %304 : vector<1x32xf32> to vector<16x32xf32>
    %306 = arith.addf %303, %305 : vector<16x32xf32>
    %307 = arith.addf %306, %203 : vector<16x32xf32>
    %c14 = arith.constant 14 : index
    %c0_101 = arith.constant 0 : index
    %308 = vector.load %arg3[%c14, %c0_101] : memref<20x128xf32, #tpu.memory_space<vmem>>, vector<1x32xf32>
    %c15 = arith.constant 15 : index
    %c0_102 = arith.constant 0 : index
    %309 = vector.load %arg3[%c15, %c0_102] : memref<20x128xf32, #tpu.memory_space<vmem>>, vector<1x32xf32>
    %cst_103 = arith.constant dense<0.000000e+00> : vector<16xf32>
    %310 = vector.multi_reduction <add>, %307, %cst_103 [1] : vector<16x32xf32> to vector<16xf32>
    %311 = vector.shape_cast %310 : vector<16xf32> to vector<16x1xf32>
    %cst_104 = arith.constant 3.200000e+01 : f32
    %312 = vector.broadcast %cst_104 : f32 to vector<16x1xf32>
    %313 = arith.divf %311, %312 : vector<16x1xf32>
    %314 = vector.broadcast %313 : vector<16x1xf32> to vector<16x32xf32>
    %315 = arith.subf %307, %314 : vector<16x32xf32>
    %316 = arith.mulf %315, %315 : vector<16x32xf32>
    %cst_105 = arith.constant dense<0.000000e+00> : vector<16xf32>
    %317 = vector.multi_reduction <add>, %316, %cst_105 [1] : vector<16x32xf32> to vector<16xf32>
    %318 = vector.shape_cast %317 : vector<16xf32> to vector<16x1xf32>
    %cst_106 = arith.constant 3.200000e+01 : f32
    %319 = vector.broadcast %cst_106 : f32 to vector<16x1xf32>
    %320 = arith.divf %318, %319 : vector<16x1xf32>
    %321 = vector.broadcast %313 : vector<16x1xf32> to vector<16x32xf32>
    %322 = arith.subf %307, %321 : vector<16x32xf32>
    %cst_107 = arith.constant 9.99999996E-13 : f32
    %323 = vector.broadcast %cst_107 : f32 to vector<16x1xf32>
    %324 = arith.addf %320, %323 : vector<16x1xf32>
    %325 = math.rsqrt %324 : vector<16x1xf32>
    %326 = vector.broadcast %325 : vector<16x1xf32> to vector<16x32xf32>
    %327 = arith.mulf %322, %326 : vector<16x32xf32>
    %328 = vector.broadcast %308 : vector<1x32xf32> to vector<16x32xf32>
    %329 = arith.mulf %327, %328 : vector<16x32xf32>
    %330 = vector.broadcast %309 : vector<1x32xf32> to vector<16x32xf32>
    %331 = arith.addf %329, %330 : vector<16x32xf32>
    %332 = arith.truncf %331 : vector<16x32xf32> to vector<16x32xbf16>
    %c160 = arith.constant 160 : index
    %c0_108 = arith.constant 0 : index
    %333 = vector.load %arg2[%c160, %c0_108] : memref<384x128xbf16, #tpu.memory_space<vmem>>, vector<32x64xbf16>
    %cst_109 = arith.constant dense<0.000000e+00> : vector<16x64xf32>
    %334 = tpu.matmul %332, %333, %cst_109 {dimension_numbers = #tpu.dot_dimension_numbers<[1], [0], [0], [1], [0, 0, 1, 1], [], []>} : vector<16x32xbf16>, vector<32x64xbf16>, vector<16x64xf32> -> vector<16x64xf32>
    %c16 = arith.constant 16 : index
    %c0_110 = arith.constant 0 : index
    %335 = vector.load %arg3[%c16, %c0_110] : memref<20x128xf32, #tpu.memory_space<vmem>>, vector<1x64xf32>
    %336 = vector.broadcast %335 : vector<1x64xf32> to vector<16x64xf32>
    %337 = arith.addf %334, %336 : vector<16x64xf32>
    %cst_111 = arith.constant 5.000000e-01 : f32
    %338 = vector.broadcast %cst_111 : f32 to vector<16x64xf32>
    %339 = arith.mulf %338, %337 : vector<16x64xf32>
    %cst_112 = arith.constant 4.471500e-02 : f32
    %340 = vector.broadcast %cst_112 : f32 to vector<16x64xf32>
    %341 = arith.mulf %340, %337 : vector<16x64xf32>
    %342 = arith.mulf %341, %337 : vector<16x64xf32>
    %343 = arith.mulf %342, %337 : vector<16x64xf32>
    %344 = arith.addf %337, %343 : vector<16x64xf32>
    %cst_113 = arith.constant 0.797884583 : f32
    %345 = vector.broadcast %cst_113 : f32 to vector<16x64xf32>
    %346 = arith.mulf %345, %344 : vector<16x64xf32>
    %347 = math.tanh %346 : vector<16x64xf32>
    %cst_114 = arith.constant 1.000000e+00 : f32
    %348 = vector.broadcast %cst_114 : f32 to vector<16x64xf32>
    %349 = arith.addf %348, %347 : vector<16x64xf32>
    %350 = arith.mulf %339, %349 : vector<16x64xf32>
    %351 = arith.truncf %350 : vector<16x64xf32> to vector<16x64xbf16>
    %c256 = arith.constant 256 : index
    %c0_115 = arith.constant 0 : index
    %352 = vector.load %arg2[%c256, %c0_115] : memref<384x128xbf16, #tpu.memory_space<vmem>>, vector<64x32xbf16>
    %cst_116 = arith.constant dense<0.000000e+00> : vector<16x32xf32>
    %353 = tpu.matmul %351, %352, %cst_116 {dimension_numbers = #tpu.dot_dimension_numbers<[1], [0], [0], [1], [0, 0, 1, 1], [], []>} : vector<16x64xbf16>, vector<64x32xbf16>, vector<16x32xf32> -> vector<16x32xf32>
    %c17 = arith.constant 17 : index
    %c0_117 = arith.constant 0 : index
    %354 = vector.load %arg3[%c17, %c0_117] : memref<20x128xf32, #tpu.memory_space<vmem>>, vector<1x32xf32>
    %355 = vector.broadcast %354 : vector<1x32xf32> to vector<16x32xf32>
    %356 = arith.addf %353, %355 : vector<16x32xf32>
    %357 = arith.addf %356, %331 : vector<16x32xf32>
    %c18 = arith.constant 18 : index
    %c0_118 = arith.constant 0 : index
    %358 = vector.load %arg3[%c18, %c0_118] : memref<20x128xf32, #tpu.memory_space<vmem>>, vector<1x32xf32>
    %c19 = arith.constant 19 : index
    %c0_119 = arith.constant 0 : index
    %359 = vector.load %arg3[%c19, %c0_119] : memref<20x128xf32, #tpu.memory_space<vmem>>, vector<1x32xf32>
    %cst_120 = arith.constant dense<0.000000e+00> : vector<16xf32>
    %360 = vector.multi_reduction <add>, %357, %cst_120 [1] : vector<16x32xf32> to vector<16xf32>
    %361 = vector.shape_cast %360 : vector<16xf32> to vector<16x1xf32>
    %cst_121 = arith.constant 3.200000e+01 : f32
    %362 = vector.broadcast %cst_121 : f32 to vector<16x1xf32>
    %363 = arith.divf %361, %362 : vector<16x1xf32>
    %364 = vector.broadcast %363 : vector<16x1xf32> to vector<16x32xf32>
    %365 = arith.subf %357, %364 : vector<16x32xf32>
    %366 = arith.mulf %365, %365 : vector<16x32xf32>
    %cst_122 = arith.constant dense<0.000000e+00> : vector<16xf32>
    %367 = vector.multi_reduction <add>, %366, %cst_122 [1] : vector<16x32xf32> to vector<16xf32>
    %368 = vector.shape_cast %367 : vector<16xf32> to vector<16x1xf32>
    %cst_123 = arith.constant 3.200000e+01 : f32
    %369 = vector.broadcast %cst_123 : f32 to vector<16x1xf32>
    %370 = arith.divf %368, %369 : vector<16x1xf32>
    %371 = vector.broadcast %363 : vector<16x1xf32> to vector<16x32xf32>
    %372 = arith.subf %357, %371 : vector<16x32xf32>
    %cst_124 = arith.constant 9.99999996E-13 : f32
    %373 = vector.broadcast %cst_124 : f32 to vector<16x1xf32>
    %374 = arith.addf %370, %373 : vector<16x1xf32>
    %375 = math.rsqrt %374 : vector<16x1xf32>
    %376 = vector.broadcast %375 : vector<16x1xf32> to vector<16x32xf32>
    %377 = arith.mulf %372, %376 : vector<16x32xf32>
    %378 = vector.broadcast %358 : vector<1x32xf32> to vector<16x32xf32>
    %379 = arith.mulf %377, %378 : vector<16x32xf32>
    %380 = vector.broadcast %359 : vector<1x32xf32> to vector<16x32xf32>
    %381 = arith.addf %379, %380 : vector<16x32xf32>
    %382 = vector.extract_strided_slice %381 {offsets = [0, 0], sizes = [1, 32], strides = [1, 1]} : vector<16x32xf32> to vector<1x32xf32>
    %383 = vector.extract_strided_slice %381 {offsets = [8, 0], sizes = [1, 32], strides = [1, 1]} : vector<16x32xf32> to vector<1x32xf32>
    %384 = tpu.concatenate %382, %383 in 0 : vector<1x32xf32>, vector<1x32xf32> -> vector<2x32xf32>
    %385 = arith.truncf %384 : vector<2x32xf32> to vector<2x32xbf16>
    %c320 = arith.constant 320 : index
    %c0_125 = arith.constant 0 : index
    %386 = vector.load %arg2[%c320, %c0_125] : memref<384x128xbf16, #tpu.memory_space<vmem>>, vector<32x32xbf16>
    %cst_126 = arith.constant dense<0.000000e+00> : vector<2x32xf32>
    %387 = tpu.matmul %385, %386, %cst_126 {dimension_numbers = #tpu.dot_dimension_numbers<[1], [0], [0], [1], [0, 0, 1, 1], [], []>} : vector<2x32xbf16>, vector<32x32xbf16>, vector<2x32xf32> -> vector<2x32xf32>
    %c2 = arith.constant 2 : index
    %c0_127 = arith.constant 0 : index
    %388 = vector.load %arg3[%c2, %c0_127] : memref<20x128xf32, #tpu.memory_space<vmem>>, vector<1x32xf32>
    %389 = vector.broadcast %388 : vector<1x32xf32> to vector<2x32xf32>
    %390 = arith.addf %387, %389 : vector<2x32xf32>
    %391 = math.tanh %390 : vector<2x32xf32>
    %392 = arith.truncf %391 : vector<2x32xf32> to vector<2x32xbf16>
    %c352 = arith.constant 352 : index
    %c0_128 = arith.constant 0 : index
    %393 = vector.load %arg2[%c352, %c0_128] : memref<384x128xbf16, #tpu.memory_space<vmem>>, vector<32x128xbf16>
    %cst_129 = arith.constant dense<0.000000e+00> : vector<2x128xf32>
    %394 = tpu.matmul %392, %393, %cst_129 {dimension_numbers = #tpu.dot_dimension_numbers<[1], [0], [0], [1], [0, 0, 1, 1], [], []>} : vector<2x32xbf16>, vector<32x128xbf16>, vector<2x128xf32> -> vector<2x128xf32>
    %c3 = arith.constant 3 : index
    %c0_130 = arith.constant 0 : index
    %395 = vector.load %arg3[%c3, %c0_130] : memref<20x128xf32, #tpu.memory_space<vmem>>, vector<1x128xf32>
    %396 = vector.broadcast %395 : vector<1x128xf32> to vector<2x128xf32>
    %397 = arith.addf %394, %396 : vector<2x128xf32>
    %c0_131 = arith.constant 0 : index
    %c0_132 = arith.constant 0 : index
    %398 = vector.load %arg4[%c0_131, %c0_132] : memref<2x128xf32, #tpu.memory_space<vmem>>, vector<2x128xf32>
    tpu.vector_store %arg4[%c0_131, %c0_132], %397 {strides = array<i32>} : memref<2x128xf32, #tpu.memory_space<vmem>>, vector<2x128xf32>,
    return
  }
}

</mosaic_0001>

<llo_original>
// kernel: intent_recognizer_forward.1
$region0: #{intent_recognizer_forward.1}
  #allocation0 [shape = 'u32[]', space=smem, size = 0x4, offset = 0x4, fixed_abs, tag = 'smem constant byte address 0x4 - core index']
  #allocation1 [shape = 'u32[144,128]{1,0:T(1,128)}', space=vmem, size = 0x12000, scoped, tag = 'internal scratch']
  %s0 = inlined_call_operand.vmem [shape: f32[16,32], index: 0, kind: input, shape index: {}]
  %s1 = inlined_call_operand.vmem [shape: f32[16,16], index: 1, kind: input, shape index: {}]
  %s2 = inlined_call_operand.vmem [shape: bf16[384,128], index: 2, kind: input, shape index: {}]
  %s3 = inlined_call_operand.vmem [shape: f32[20,128], index: 3, kind: input, shape index: {}]
  %s4 = inlined_call_operand.hbm [shape: f32[2,128], index: 4, kind: output, shape index: {}]
  %s5 = sld [smem:[#allocation0]]
  $region26: #{intent_recognizer_forward.1} parent=0
    _
  %s7 = ssub.s32 1, %s5
  %s8 = scalar_select 0, %s7, %s5
  $region1: #{intent_recognizer_forward.1} parent=0
    #allocation2 [shape = 'u8[1024]{0}', space=vmem, size = 0x400, scoped, tag = 'output window, operand 0, single buffered']
    #allocation3 [shape = 's32[1]{0}', space=sflag, size = 0x4, scoped, tag = 'scoped memory for intent_recognizer_forward.1']
    %9 = vsyncpa [#allocation3], 0
    // Predicated region
    $region2: #{intent_recognizer_forward.1} parent=1 // pred_check
      _
    $region3: #{intent_recognizer_forward.1} parent=1 // pred_check_branch
      %11 = sbr.rel (0) target = $region5
    $region4: #{intent_recognizer_forward.1} parent=1 // pred_region
      _
    $region5: #{intent_recognizer_forward.1} parent=1 // pred_fallthru
      _
    // Predicated region
    $region6: #{intent_recognizer_forward.1} parent=1 // pred_check
      _
    $region7: #{intent_recognizer_forward.1} parent=1 // pred_check_branch
      %13 = sbr.rel (0) target = $region9
    $region8: #{intent_recognizer_forward.1} parent=1 // pred_region
      _
    $region9: #{intent_recognizer_forward.1} parent=1 // pred_fallthru
      _
    // Predicated region
    $region10: #{intent_recognizer_forward.1} parent=1 // pred_check
      _
    $region11: #{intent_recognizer_forward.1} parent=1 // pred_check_branch
      %15 = sbr.rel (0) target = $region13
    $region12: #{intent_recognizer_forward.1} parent=1 // pred_region
      _
    $region13: #{intent_recognizer_forward.1} parent=1 // pred_fallthru
      _
    // Predicated region
    $region14: #{intent_recognizer_forward.1} parent=1 // pred_check
      _
    $region15: #{intent_recognizer_forward.1} parent=1 // pred_check_branch
      %17 = sbr.rel (0) target = $region17
    $region16: #{intent_recognizer_forward.1} parent=1 // pred_region
      _
    $region17: #{intent_recognizer_forward.1} parent=1 // pred_fallthru
      _
    %v19 = vld [vmem:[%s1] sm:$0xff]
    %v20 = vld [vmem:[%s1 + $0x8] sm:$0xff]
    %v21 = vld [vmem:[%s0] sm:$0xff]
    %v22 = vld [vmem:[%s0 + $0x8] sm:$0xff]
    %v23 = vld [vmem:[%s3] sm:$0x1]
    %v24 = vld [vmem:[%s3 + $0x1] sm:$0x1]
    %vm25 = vcmask 261120
    %v26 = vsel %vm25, %v21, 0.0
    %27 = vadd.xlane.f32.xlu0 %v26
    %v28 = vpop.xlane.xlu0 %27
    %v29 = vsel %vm25, %v22, 0.0
    %30 = vadd.xlane.f32.xlu0 %v29
    %v31 = vpop.xlane.xlu0 %30
    %v32 = vrcp.pop 32.0
    %v33 = vmul.f32 %v28, %v32
    %v34 = vmul.f32 %v31, %v32
    %v35 = vsub.f32 %v21, %v33
    %v36 = vsub.f32 %v22, %v34
    %v37 = vmul.f32 %v35, %v35
    %v38 = vmul.f32 %v36, %v36
    %v39 = vsel %vm25, %v37, 0.0
    %40 = vadd.xlane.f32.xlu0 %v39
    %v41 = vpop.xlane.xlu0 %40
    %v42 = vsel %vm25, %v38, 0.0
    %43 = vadd.xlane.f32.xlu0 %v42
    %v44 = vpop.xlane.xlu0 %43
    %v45 = vmul.f32 %v41, %v32
    %v46 = vmul.f32 %v44, %v32
    %v47 = vadd.f32 %v45, 1e-12
    %v48 = vadd.f32 %v46, 1e-12
    %v49 = vrsqrt.pop %v47
    %v50 = vrsqrt.pop %v48
    %v51 = vmul.f32 %v35, %v49
    %v52 = vmul.f32 %v36, %v50
    %v53 = vlaneseq
    %v54 = vshrl.u32 %v53, 7
    %v55 = vsub.s32 0, %v54
    %v56 = vrot.slane %v23, %v55
    %v57 = vmul.f32 %v51, %v56
    %v58 = vmul.f32 %v52, %v56
    %v59 = vlaneseq
    %v60 = vshrl.u32 %v59, 7
    %v61 = vsub.s32 0, %v60
    %v62 = vrot.slane %v24, %v61
    %v63 = vadd.f32 %v57, %v62
    %v64 = vadd.f32 %v58, %v62
    %v65 = vpack.c.bf16 %v64, %v63
    %v66 = vld [vmem:[%s2] sm:$0xf]
    %v67 = vld [vmem:[%s2 + $0x4] sm:$0xf]
    %v68 = vld [vmem:[%s2 + $0x8] sm:$0xf]
    %v69 = vld [vmem:[%s2 + $0xc] sm:$0xf]
    %v70 = vld [vmem:[%s3 + $0x4] sm:$0x1]
    %v71 = vlaneseq
    %v72 = vshrl.u32 %v71, 7
    %v73 = vsub.s32 0, %v72
    %v74 = vrot.slane %v70, %v73
    %v79 = vunpack.c.l.b16 %v66
    %v80 = vunpack.c.l.b16 %v67
    %v81 = vunpack.c.l.b16 %v68
    %v82 = vunpack.c.l.b16 %v69
    %v83 = vpack.c.b16 %v80, %v79
    %v84 = vpack.c.b16 %v82, %v81
    %v88 = vsel %vm25, %v65, 0
    %90 = vmatprep.subr.bf16.mxu0 0
    %91 = vmatpush1.bf16.msra.mxu0 %v83
    %92 = vmatprep.subr.bf16.mxu0 0
    %93 = vmatpush1.bf16.msra.mxu0 %v84
    %94 = vmatprep.subr.bf16.mxu0 0
    %95 = vmatpush1.bf16.msra.mxu0 0
    %96 = vmatprep.subr.bf16.mxu0 0
    %97 = vmatpush1.bf16.msra.mxu0 0
    %98 = vmatprep.subr.bf16.mxu0 0
    %99 = vmatpush1.bf16.msra.mxu0 0
    %100 = vmatprep.subr.bf16.mxu0 0
    %101 = vmatpush1.bf16.msra.mxu0 0
    %102 = vmatprep.subr.bf16.mxu0 0
    %103 = vmatpush1.bf16.msra.mxu0 0
    %104 = vmatprep.subr.bf16.mxu0 0
    %105 = vmatpush1.bf16.msra.mxu0 0
    %106 = vmatprep.subr.bf16.mxu0 0
    %107 = vmatpush1.bf16.msra.mxu0 0
    %108 = vmatprep.subr.bf16.mxu0 0
    %109 = vmatpush1.bf16.msra.mxu0 0
    %110 = vmatprep.subr.bf16.mxu0 0
    %111 = vmatpush1.bf16.msra.mxu0 0
    %112 = vmatprep.subr.bf16.mxu0 0
    %113 = vmatpush1.bf16.msra.mxu0 0
    %114 = vmatprep.subr.bf16.mxu0 0
    %115 = vmatpush1.bf16.msra.mxu0 0
    %116 = vmatprep.subr.bf16.mxu0 0
    %117 = vmatpush1.bf16.msra.mxu0 0
    %118 = vmatprep.subr.bf16.mxu0 0
    %119 = vmatpush1.bf16.msra.mxu0 0
    %120 = vmatprep.subr.bf16.mxu0 0
    %121 = vmatpush1.bf16.msra.mxu0 0
    %122 = vmatprep.mubr.bf16.mxu0 0
    %123 = vmatmul.mubr.bf16.gmra.mrb[0].mxu0 %v88
    %v124 = vpop.f32.mrb[0].mxu0
    %v125 = vadd.f32 %v74, %v124
    %v126 = vpop.f32.mrb[0].mxu0
    %v127 = vpop.f32.mrb[0].mxu0
    %v128 = vadd.f32 %v74, %v127
    %v129 = vpop.f32.mrb[0].mxu0
    %130 = vdwg.mxu0
    %v131 = vpack.c.bf16 %v128, %v125
    %133 = vrot.lane.b32.xlu0 %v131, 96
    %v134 = vpop.permute.xlu0 %133
    %vm135 = vcmask 64512
    %v137 = vsel %vm135, %v131, 0
    %v140 = vsel %vm135, %v134, 0
    %142 = vmatprep.subr.bf16.mxu0 0
    %143 = vmatpush1.bf16.xpose.msra.mxu0 %v140
    %144 = vmatprep.subr.bf16.mxu0 0
    %145 = vmatpush1.bf16.xpose.msra.mxu0 0
    %146 = vmatprep.subr.bf16.mxu0 0
    %147 = vmatpush1.bf16.xpose.msra.mxu0 0
    %148 = vmatprep.subr.bf16.mxu0 0
    %149 = vmatpush1.bf16.xpose.msra.mxu0 0
    %150 = vmatprep.subr.bf16.mxu0 0
    %151 = vmatpush1.bf16.xpose.msra.mxu0 0
    %152 = vmatprep.subr.bf16.mxu0 0
    %153 = vmatpush1.bf16.xpose.msra.mxu0 0
    %154 = vmatprep.subr.bf16.mxu0 0
    %155 = vmatpush1.bf16.xpose.msra.mxu0 0
    %156 = vmatprep.subr.bf16.mxu0 0
    %157 = vmatpush1.bf16.xpose.msra.mxu0 0
    %158 = vmatprep.subr.bf16.mxu0 0
    %159 = vmatpush1.bf16.xpose.msra.mxu0 0
    %160 = vmatprep.subr.bf16.mxu0 0
    %161 = vmatpush1.bf16.xpose.msra.mxu0 0
    %162 = vmatprep.subr.bf16.mxu0 0
    %163 = vmatpush1.bf16.xpose.msra.mxu0 0
    %164 = vmatprep.subr.bf16.mxu0 0
    %165 = vmatpush1.bf16.xpose.msra.mxu0 0
    %166 = vmatprep.subr.bf16.mxu0 0
    %167 = vmatpush1.bf16.xpose.msra.mxu0 0
    %168 = vmatprep.subr.bf16.mxu0 0
    %169 = vmatpush1.bf16.xpose.msra.mxu0 0
    %170 = vmatprep.subr.bf16.mxu0 0
    %171 = vmatpush1.bf16.xpose.msra.mxu0 0
    %172 = vmatprep.subr.bf16.mxu0 0
    %173 = vmatpush1.bf16.xpose.msra.mxu0 0
    %174 = vmatprep.mubr.bf16.mxu0 0
    %175 = vmatmul.mubr.bf16.gmra.mrb[0].mxu0 %v137
    %v176 = vpop.f32.mrb[0].mxu0
    %v177 = vadd.f32 0.0, %v176
    %v178 = vpop.f32.mrb[0].mxu0
    %v179 = vpop.f32.mrb[0].mxu0
    %v180 = vadd.f32 0.0, %v179
    %v181 = vpop.f32.mrb[0].mxu0
    %182 = vdwg.mxu0
    %v183 = vmul.f32 %v177, 0.35355338
    %v184 = vmul.f32 %v180, 0.35355338
    %v185 = vadd.f32 %v183, %v19
    %v186 = vadd.f32 %v184, %v20
    %vm187 = vcmask 130048
    %v188 = vsel %vm187, %v185, -inf
    %189 = vmax.xlane.f32.xlu0 %v188
    %v190 = vpop.xlane.xlu0 %189
    %v191 = vsel %vm187, %v186, -inf
    %192 = vmax.xlane.f32.xlu0 %v191
    %v193 = vpop.xlane.xlu0 %192
    %v194 = vsub.f32 %v185, %v190
    %v195 = vsub.f32 %v186, %v193
    %v196 = vmul.f32 %v194, 1.442695
    %v197 = vpow.pop %v196
    %v198 = vmul.f32 %v195, 1.442695
    %v199 = vpow.pop %v198
    %v200 = vsel %vm187, %v197, 0.0
    %201 = vadd.xlane.f32.xlu0 %v200
    %v202 = vpop.xlane.xlu0 %201
    %v203 = vsel %vm187, %v199, 0.0
    %204 = vadd.xlane.f32.xlu0 %v203
    %v205 = vpop.xlane.xlu0 %204
    %v206 = vrcp.pop %v202
    %v207 = vrcp.pop %v205
    %v208 = vmul.f32 %v197, %v206
    %v209 = vmul.f32 %v199, %v207
    %v210 = vpack.c.bf16 %v209, %v208
    %211 = vrot.lane.b32.xlu0 %v131, 64
    %v212 = vpop.permute.xlu0 %211
    %v215 = vsel %vm187, %v210, 0
    %217 = vmatprep.subr.bf16.mxu0 0
    %218 = vmatpush1.bf16.msra.mxu0 %v212
    %219 = vmatprep.subr.bf16.mxu0 0
    %220 = vmatpush1.bf16.msra.mxu0 0
    %221 = vmatprep.subr.bf16.mxu0 0
    %222 = vmatpush1.bf16.msra.mxu0 0
    %223 = vmatprep.subr.bf16.mxu0 0
    %224 = vmatpush1.bf16.msra.mxu0 0
    %225 = vmatprep.subr.bf16.mxu0 0
    %226 = vmatpush1.bf16.msra.mxu0 0
    %227 = vmatprep.subr.bf16.mxu0 0
    %228 = vmatpush1.bf16.msra.mxu0 0
    %229 = vmatprep.subr.bf16.mxu0 0
    %230 = vmatpush1.bf16.msra.mxu0 0
    %231 = vmatprep.subr.bf16.mxu0 0
    %232 = vmatpush1.bf16.msra.mxu0 0
    %233 = vmatprep.subr.bf16.mxu0 0
    %234 = vmatpush1.bf16.msra.mxu0 0
    %235 = vmatprep.subr.bf16.mxu0 0
    %236 = vmatpush1.bf16.msra.mxu0 0
    %237 = vmatprep.subr.bf16.mxu0 0
    %238 = vmatpush1.bf16.msra.mxu0 0
    %239 = vmatprep.subr.bf16.mxu0 0
    %240 = vmatpush1.bf16.msra.mxu0 0
    %241 = vmatprep.subr.bf16.mxu0 0
    %242 = vmatpush1.bf16.msra.mxu0 0
    %243 = vmatprep.subr.bf16.mxu0 0
    %244 = vmatpush1.bf16.msra.mxu0 0
    %245 = vmatprep.subr.bf16.mxu0 0
    %246 = vmatpush1.bf16.msra.mxu0 0
    %247 = vmatprep.subr.bf16.mxu0 0
    %248 = vmatpush1.bf16.msra.mxu0 0
    %249 = vmatprep.mubr.bf16.mxu0 0
    %250 = vmatmul.mubr.bf16.gmra.mrb[0].mxu0 %v215
    %v251 = vpop.f32.mrb[0].mxu0
    %v252 = vadd.f32 0.0, %v251
    %v253 = vpop.f32.mrb[0].mxu0
    %v254 = vpop.f32.mrb[0].mxu0
    %v255 = vadd.f32 0.0, %v254
    %v256 = vpop.f32.mrb[0].mxu0
    %257 = vdwg.mxu0
    %v258 = vld [vmem:[%s2 + $0x20] sm:$0xf]
    %v259 = vpack.c.bf16 %v255, %v252
    %260 = vrot.lane.b32.xlu0 %v131, 120
    %v261 = vpop.permute.xlu0 %260
    %262 = vrot.lane.b32.xlu0 %v131, 88
    %v263 = vpop.permute.xlu0 %262
    %v265 = vsel %vm135, %v261, 0
    %v268 = vsel %vm135, %v263, 0
    %270 = vmatprep.subr.bf16.mxu0 0
    %271 = vmatpush1.bf16.xpose.msra.mxu0 %v268
    %272 = vmatprep.subr.bf16.mxu0 0
    %273 = vmatpush1.bf16.xpose.msra.mxu0 0
    %274 = vmatprep.subr.bf16.mxu0 0
    %275 = vmatpush1.bf16.xpose.msra.mxu0 0
    %276 = vmatprep.subr.bf16.mxu0 0
    %277 = vmatpush1.bf16.xpose.msra.mxu0 0
    %278 = vmatprep.subr.bf16.mxu0 0
    %279 = vmatpush1.bf16.xpose.msra.mxu0 0
    %280 = vmatprep.subr.bf16.mxu0 0
    %281 = vmatpush1.bf16.xpose.msra.mxu0 0
    %282 = vmatprep.subr.bf16.mxu0 0
    %283 = vmatpush1.bf16.xpose.msra.mxu0 0
    %284 = vmatprep.subr.bf16.mxu0 0
    %285 = vmatpush1.bf16.xpose.msra.mxu0 0
    %286 = vmatprep.subr.bf16.mxu0 0
    %287 = vmatpush1.bf16.xpose.msra.mxu0 0
    %288 = vmatprep.subr.bf16.mxu0 0
    %289 = vmatpush1.bf16.xpose.msra.mxu0 0
    %290 = vmatprep.subr.bf16.mxu0 0
    %291 = vmatpush1.bf16.xpose.msra.mxu0 0
    %292 = vmatprep.subr.bf16.mxu0 0
    %293 = vmatpush1.bf16.xpose.msra.mxu0 0
    %294 = vmatprep.subr.bf16.mxu0 0
    %295 = vmatpush1.bf16.xpose.msra.mxu0 0
    %296 = vmatprep.subr.bf16.mxu0 0
    %297 = vmatpush1.bf16.xpose.msra.mxu0 0
    %298 = vmatprep.subr.bf16.mxu0 0
    %299 = vmatpush1.bf16.xpose.msra.mxu0 0
    %300 = vmatprep.subr.bf16.mxu0 0
    %301 = vmatpush1.bf16.xpose.msra.mxu0 0
    %302 = vmatprep.mubr.bf16.mxu0 0
    %303 = vmatmul.mubr.bf16.gmra.mrb[0].mxu0 %v265
    %v304 = vpop.f32.mrb[0].mxu0
    %v305 = vadd.f32 0.0, %v304
    %v306 = vpop.f32.mrb[0].mxu0
    %v307 = vpop.f32.mrb[0].mxu0
    %v308 = vadd.f32 0.0, %v307
    %v309 = vpop.f32.mrb[0].mxu0
    %310 = vdwg.mxu0
    %v311 = vmul.f32 %v305, 0.35355338
    %v312 = vmul.f32 %v308, 0.35355338
    %v313 = vadd.f32 %v311, %v19
    %v314 = vadd.f32 %v312, %v20
    %v315 = vsel %vm187, %v313, -inf
    %316 = vmax.xlane.f32.xlu0 %v315
    %v317 = vpop.xlane.xlu0 %316
    %v318 = vsel %vm187, %v314, -inf
    %319 = vmax.xlane.f32.xlu0 %v318
    %v320 = vpop.xlane.xlu0 %319
    %v321 = vsub.f32 %v313, %v317
    %v322 = vsub.f32 %v314, %v320
    %v323 = vmul.f32 %v321, 1.442695
    %v324 = vpow.pop %v323
    %v325 = vmul.f32 %v322, 1.442695
    %v326 = vpow.pop %v325
    %v327 = vsel %vm187, %v324, 0.0
    %328 = vadd.xlane.f32.xlu0 %v327
    %v329 = vpop.xlane.xlu0 %328
    %v330 = vsel %vm187, %v326, 0.0
    %331 = vadd.xlane.f32.xlu0 %v330
    %v332 = vpop.xlane.xlu0 %331
    %v333 = vrcp.pop %v329
    %v334 = vrcp.pop %v332
    %v335 = vmul.f32 %v324, %v333
    %v336 = vmul.f32 %v326, %v334
    %v337 = vpack.c.bf16 %v336, %v335
    %338 = vrot.lane.b32.xlu0 %v131, 56
    %v339 = vpop.permute.xlu0 %338
    %v342 = vsel %vm187, %v337, 0
    %344 = vmatprep.subr.bf16.mxu0 0
    %345 = vmatpush1.bf16.msra.mxu0 %v339
    %346 = vmatprep.subr.bf16.mxu0 0
    %347 = vmatpush1.bf16.msra.mxu0 0
    %348 = vmatprep.subr.bf16.mxu0 0
    %349 = vmatpush1.bf16.msra.mxu0 0
    %350 = vmatprep.subr.bf16.mxu0 0
    %351 = vmatpush1.bf16.msra.mxu0 0
    %352 = vmatprep.subr.bf16.mxu0 0
    %353 = vmatpush1.bf16.msra.mxu0 0
    %354 = vmatprep.subr.bf16.mxu0 0
    %355 = vmatpush1.bf16.msra.mxu0 0
    %356 = vmatprep.subr.bf16.mxu0 0
    %357 = vmatpush1.bf16.msra.mxu0 0
    %358 = vmatprep.subr.bf16.mxu0 0
    %359 = vmatpush1.bf16.msra.mxu0 0
    %360 = vmatprep.subr.bf16.mxu0 0
    %361 = vmatpush1.bf16.msra.mxu0 0
    %362 = vmatprep.subr.bf16.mxu0 0
    %363 = vmatpush1.bf16.msra.mxu0 0
    %364 = vmatprep.subr.bf16.mxu0 0
    %365 = vmatpush1.bf16.msra.mxu0 0
    %366 = vmatprep.subr.bf16.mxu0 0
    %367 = vmatpush1.bf16.msra.mxu0 0
    %368 = vmatprep.subr.bf16.mxu0 0
    %369 = vmatpush1.bf16.msra.mxu0 0
    %370 = vmatprep.subr.bf16.mxu0 0
    %371 = vmatpush1.bf16.msra.mxu0 0
    %372 = vmatprep.subr.bf16.mxu0 0
    %373 = vmatpush1.bf16.msra.mxu0 0
    %374 = vmatprep.subr.bf16.mxu0 0
    %375 = vmatpush1.bf16.msra.mxu0 0
    %376 = vmatprep.mubr.bf16.mxu0 0
    %377 = vmatmul.mubr.bf16.gmra.mrb[0].mxu0 %v342
    %v378 = vpop.f32.mrb[0].mxu0
    %v379 = vadd.f32 0.0, %v378
    %v380 = vpop.f32.mrb[0].mxu0
    %v381 = vpop.f32.mrb[0].mxu0
    %v382 = vadd.f32 0.0, %v381
    %v383 = vpop.f32.mrb[0].mxu0
    %384 = vdwg.mxu0
    %v385 = vld [vmem:[%s2 + $0x24] sm:$0xf]
    %v386 = vpack.c.bf16 %v382, %v379
    %v388 = vsel %vm135, %v386, 0
    %vm390 = vcmask 1043456
    %v392 = vsel %vm390, %v385, 0
    %394 = vmatprep.subr.bf16.mxu0 0
    %395 = vmatpush1.bf16.msra.mxu0 %v392
    %396 = vmatprep.subr.bf16.mxu0 0
    %397 = vmatpush1.bf16.msra.mxu0 0
    %398 = vmatprep.subr.bf16.mxu0 0
    %399 = vmatpush1.bf16.msra.mxu0 0
    %400 = vmatprep.subr.bf16.mxu0 0
    %401 = vmatpush1.bf16.msra.mxu0 0
    %402 = vmatprep.subr.bf16.mxu0 0
    %403 = vmatpush1.bf16.msra.mxu0 0
    %404 = vmatprep.subr.bf16.mxu0 0
    %405 = vmatpush1.bf16.msra.mxu0 0
    %406 = vmatprep.subr.bf16.mxu0 0
    %407 = vmatpush1.bf16.msra.mxu0 0
    %408 = vmatprep.subr.bf16.mxu0 0
    %409 = vmatpush1.bf16.msra.mxu0 0
    %410 = vmatprep.subr.bf16.mxu0 0
    %411 = vmatpush1.bf16.msra.mxu0 0
    %412 = vmatprep.subr.bf16.mxu0 0
    %413 = vmatpush1.bf16.msra.mxu0 0
    %414 = vmatprep.subr.bf16.mxu0 0
    %415 = vmatpush1.bf16.msra.mxu0 0
    %416 = vmatprep.subr.bf16.mxu0 0
    %417 = vmatpush1.bf16.msra.mxu0 0
    %418 = vmatprep.subr.bf16.mxu0 0
    %419 = vmatpush1.bf16.msra.mxu0 0
    %420 = vmatprep.subr.bf16.mxu0 0
    %421 = vmatpush1.bf16.msra.mxu0 0
    %422 = vmatprep.subr.bf16.mxu0 0
    %423 = vmatpush1.bf16.msra.mxu0 0
    %424 = vmatprep.subr.bf16.mxu0 0
    %425 = vmatpush1.bf16.msra.mxu0 0
    %426 = vmatprep.mubr.bf16.mxu0 0
    %427 = vmatmul.mubr.bf16.gmra.mrb[0].mxu0 %v388
    %v428 = vpop.f32.mrb[0].mxu0
    %v429 = vadd.f32 0.0, %v428
    %v430 = vpop.f32.mrb[0].mxu0
    %v431 = vpop.f32.mrb[0].mxu0
    %v432 = vadd.f32 0.0, %v431
    %v433 = vpop.f32.mrb[0].mxu0
    %434 = vdwg.mxu0
    %v436 = vsel %vm135, %v259, 0
    %v439 = vsel %vm390, %v258, 0
    %441 = vmatprep.subr.bf16.mxu0 0
    %442 = vmatpush1.bf16.msra.mxu0 %v439
    %443 = vmatprep.subr.bf16.mxu0 0
    %444 = vmatpush1.bf16.msra.mxu0 0
    %445 = vmatprep.subr.bf16.mxu0 0
    %446 = vmatpush1.bf16.msra.mxu0 0
    %447 = vmatprep.subr.bf16.mxu0 0
    %448 = vmatpush1.bf16.msra.mxu0 0
    %449 = vmatprep.subr.bf16.mxu0 0
    %450 = vmatpush1.bf16.msra.mxu0 0
    %451 = vmatprep.subr.bf16.mxu0 0
    %452 = vmatpush1.bf16.msra.mxu0 0
    %453 = vmatprep.subr.bf16.mxu0 0
    %454 = vmatpush1.bf16.msra.mxu0 0
    %455 = vmatprep.subr.bf16.mxu0 0
    %456 = vmatpush1.bf16.msra.mxu0 0
    %457 = vmatprep.subr.bf16.mxu0 0
    %458 = vmatpush1.bf16.msra.mxu0 0
    %459 = vmatprep.subr.bf16.mxu0 0
    %460 = vmatpush1.bf16.msra.mxu0 0
    %461 = vmatprep.subr.bf16.mxu0 0
    %462 = vmatpush1.bf16.msra.mxu0 0
    %463 = vmatprep.subr.bf16.mxu0 0
    %464 = vmatpush1.bf16.msra.mxu0 0
    %465 = vmatprep.subr.bf16.mxu0 0
    %466 = vmatpush1.bf16.msra.mxu0 0
    %467 = vmatprep.subr.bf16.mxu0 0
    %468 = vmatpush1.bf16.msra.mxu0 0
    %469 = vmatprep.subr.bf16.mxu0 0
    %470 = vmatpush1.bf16.msra.mxu0 0
    %471 = vmatprep.subr.bf16.mxu0 0
    %472 = vmatpush1.bf16.msra.mxu0 0
    %473 = vmatprep.mubr.bf16.mxu0 0
    %474 = vmatmul.mubr.bf16.gmra.mrb[0].mxu0 %v436
    %v475 = vpop.f32.mrb[0].mxu0
    %v476 = vadd.f32 %v429, %v475
    %v477 = vpop.f32.mrb[0].mxu0
    %v478 = vpop.f32.mrb[0].mxu0
    %v479 = vadd.f32 %v432, %v478
    %v480 = vpop.f32.mrb[0].mxu0
    %481 = vdwg.mxu0
    %482 = vrot.lane.b32.xlu0 %v131, 112
    %v483 = vpop.permute.xlu0 %482
    %484 = vrot.lane.b32.xlu0 %v131, 80
    %v485 = vpop.permute.xlu0 %484
    %v487 = vsel %vm135, %v483, 0
    %v490 = vsel %vm135, %v485, 0
    %492 = vmatprep.subr.bf16.mxu0 0
    %493 = vmatpush1.bf16.xpose.msra.mxu0 %v490
    %494 = vmatprep.subr.bf16.mxu0 0
    %495 = vmatpush1.bf16.xpose.msra.mxu0 0
    %496 = vmatprep.subr.bf16.mxu0 0
    %497 = vmatpush1.bf16.xpose.msra.mxu0 0
    %498 = vmatprep.subr.bf16.mxu0 0
    %499 = vmatpush1.bf16.xpose.msra.mxu0 0
    %500 = vmatprep.subr.bf16.mxu0 0
    %501 = vmatpush1.bf16.xpose.msra.mxu0 0
    %502 = vmatprep.subr.bf16.mxu0 0
    %503 = vmatpush1.bf16.xpose.msra.mxu0 0
    %504 = vmatprep.subr.bf16.mxu0 0
    %505 = vmatpush1.bf16.xpose.msra.mxu0 0
    %506 = vmatprep.subr.bf16.mxu0 0
    %507 = vmatpush1.bf16.xpose.msra.mxu0 0
    %508 = vmatprep.subr.bf16.mxu0 0
    %509 = vmatpush1.bf16.xpose.msra.mxu0 0
    %510 = vmatprep.subr.bf16.mxu0 0
    %511 = vmatpush1.bf16.xpose.msra.mxu0 0
    %512 = vmatprep.subr.bf16.mxu0 0
    %513 = vmatpush1.bf16.xpose.msra.mxu0 0
    %514 = vmatprep.subr.bf16.mxu0 0
    %515 = vmatpush1.bf16.xpose.msra.mxu0 0
    %516 = vmatprep.subr.bf16.mxu0 0
    %517 = vmatpush1.bf16.xpose.msra.mxu0 0
    %518 = vmatprep.subr.bf16.mxu0 0
    %519 = vmatpush1.bf16.xpose.msra.mxu0 0
    %520 = vmatprep.subr.bf16.mxu0 0
    %521 = vmatpush1.bf16.xpose.msra.mxu0 0
    %522 = vmatprep.subr.bf16.mxu0 0
    %523 = vmatpush1.bf16.xpose.msra.mxu0 0
    %524 = vmatprep.mubr.bf16.mxu0 0
    %525 = vmatmul.mubr.bf16.gmra.mrb[0].mxu0 %v487
    %v526 = vpop.f32.mrb[0].mxu0
    %v527 = vadd.f32 0.0, %v526
    %v528 = vpop.f32.mrb[0].mxu0
    %v529 = vpop.f32.mrb[0].mxu0
    %v530 = vadd.f32 0.0, %v529
    %v531 = vpop.f32.mrb[0].mxu0
    %532 = vdwg.mxu0
    %v533 = vmul.f32 %v527, 0.35355338
    %v534 = vmul.f32 %v530, 0.35355338
    %v535 = vadd.f32 %v533, %v19
    %v536 = vadd.f32 %v534, %v20
    %v537 = vsel %vm187, %v535, -inf
    %538 = vmax.xlane.f32.xlu0 %v537
    %v539 = vpop.xlane.xlu0 %538
    %v540 = vsel %vm187, %v536, -inf
    %541 = vmax.xlane.f32.xlu0 %v540
    %v542 = vpop.xlane.xlu0 %541
    %v543 = vsub.f32 %v535, %v539
    %v544 = vsub.f32 %v536, %v542
    %v545 = vmul.f32 %v543, 1.442695
    %v546 = vpow.pop %v545
    %v547 = vmul.f32 %v544, 1.442695
    %v548 = vpow.pop %v547
    %v549 = vsel %vm187, %v546, 0.0
    %550 = vadd.xlane.f32.xlu0 %v549
    %v551 = vpop.xlane.xlu0 %550
    %v552 = vsel %vm187, %v548, 0.0
    %553 = vadd.xlane.f32.xlu0 %v552
    %v554 = vpop.xlane.xlu0 %553
    %v555 = vrcp.pop %v551
    %v556 = vrcp.pop %v554
    %v557 = vmul.f32 %v546, %v555
    %v558 = vmul.f32 %v548, %v556
    %v559 = vpack.c.bf16 %v558, %v557
    %560 = vrot.lane.b32.xlu0 %v131, 48
    %v561 = vpop.permute.xlu0 %560
    %v564 = vsel %vm187, %v559, 0
    %566 = vmatprep.subr.bf16.mxu0 0
    %567 = vmatpush1.bf16.msra.mxu0 %v561
    %568 = vmatprep.subr.bf16.mxu0 0
    %569 = vmatpush1.bf16.msra.mxu0 0
    %570 = vmatprep.subr.bf16.mxu0 0
    %571 = vmatpush1.bf16.msra.mxu0 0
    %572 = vmatprep.subr.bf16.mxu0 0
    %573 = vmatpush1.bf16.msra.mxu0 0
    %574 = vmatprep.subr.bf16.mxu0 0
    %575 = vmatpush1.bf16.msra.mxu0 0
    %576 = vmatprep.subr.bf16.mxu0 0
    %577 = vmatpush1.bf16.msra.mxu0 0
    %578 = vmatprep.subr.bf16.mxu0 0
    %579 = vmatpush1.bf16.msra.mxu0 0
    %580 = vmatprep.subr.bf16.mxu0 0
    %581 = vmatpush1.bf16.msra.mxu0 0
    %582 = vmatprep.subr.bf16.mxu0 0
    %583 = vmatpush1.bf16.msra.mxu0 0
    %584 = vmatprep.subr.bf16.mxu0 0
    %585 = vmatpush1.bf16.msra.mxu0 0
    %586 = vmatprep.subr.bf16.mxu0 0
    %587 = vmatpush1.bf16.msra.mxu0 0
    %588 = vmatprep.subr.bf16.mxu0 0
    %589 = vmatpush1.bf16.msra.mxu0 0
    %590 = vmatprep.subr.bf16.mxu0 0
    %591 = vmatpush1.bf16.msra.mxu0 0
    %592 = vmatprep.subr.bf16.mxu0 0
    %593 = vmatpush1.bf16.msra.mxu0 0
    %594 = vmatprep.subr.bf16.mxu0 0
    %595 = vmatpush1.bf16.msra.mxu0 0
    %596 = vmatprep.subr.bf16.mxu0 0
    %597 = vmatpush1.bf16.msra.mxu0 0
    %598 = vmatprep.mubr.bf16.mxu0 0
    %599 = vmatmul.mubr.bf16.gmra.mrb[0].mxu0 %v564
    %v600 = vpop.f32.mrb[0].mxu0
    %v601 = vadd.f32 0.0, %v600
    %v602 = vpop.f32.mrb[0].mxu0
    %v603 = vpop.f32.mrb[0].mxu0
    %v604 = vadd.f32 0.0, %v603
    %v605 = vpop.f32.mrb[0].mxu0
    %606 = vdwg.mxu0
    %v607 = vld [vmem:[%s2 + $0x28] sm:$0xf]
    %v608 = vpack.c.bf16 %v604, %v601
    %v610 = vsel %vm135, %v608, 0
    %v613 = vsel %vm390, %v607, 0
    %615 = vmatprep.subr.bf16.mxu0 0
    %616 = vmatpush1.bf16.msra.mxu0 %v613
    %617 = vmatprep.subr.bf16.mxu0 0
    %618 = vmatpush1.bf16.msra.mxu0 0
    %619 = vmatprep.subr.bf16.mxu0 0
    %620 = vmatpush1.bf16.msra.mxu0 0
    %621 = vmatprep.subr.bf16.mxu0 0
    %622 = vmatpush1.bf16.msra.mxu0 0
    %623 = vmatprep.subr.bf16.mxu0 0
    %624 = vmatpush1.bf16.msra.mxu0 0
    %625 = vmatprep.subr.bf16.mxu0 0
    %626 = vmatpush1.bf16.msra.mxu0 0
    %627 = vmatprep.subr.bf16.mxu0 0
    %628 = vmatpush1.bf16.msra.mxu0 0
    %629 = vmatprep.subr.bf16.mxu0 0
    %630 = vmatpush1.bf16.msra.mxu0 0
    %631 = vmatprep.subr.bf16.mxu0 0
    %632 = vmatpush1.bf16.msra.mxu0 0
    %633 = vmatprep.subr.bf16.mxu0 0
    %634 = vmatpush1.bf16.msra.mxu0 0
    %635 = vmatprep.subr.bf16.mxu0 0
    %636 = vmatpush1.bf16.msra.mxu0 0
    %637 = vmatprep.subr.bf16.mxu0 0
    %638 = vmatpush1.bf16.msra.mxu0 0
    %639 = vmatprep.subr.bf16.mxu0 0
    %640 = vmatpush1.bf16.msra.mxu0 0
    %641 = vmatprep.subr.bf16.mxu0 0
    %642 = vmatpush1.bf16.msra.mxu0 0
    %643 = vmatprep.subr.bf16.mxu0 0
    %644 = vmatpush1.bf16.msra.mxu0 0
    %645 = vmatprep.subr.bf16.mxu0 0
    %646 = vmatpush1.bf16.msra.mxu0 0
    %647 = vmatprep.mubr.bf16.mxu0 0
    %648 = vmatmul.mubr.bf16.gmra.mrb[0].mxu0 %v610
    %v649 = vpop.f32.mrb[0].mxu0
    %v650 = vadd.f32 0.0, %v649
    %v651 = vpop.f32.mrb[0].mxu0
    %v652 = vpop.f32.mrb[0].mxu0
    %v653 = vadd.f32 0.0, %v652
    %v654 = vpop.f32.mrb[0].mxu0
    %655 = vdwg.mxu0
    %v656 = vadd.f32 %v476, %v650
    %v657 = vadd.f32 %v479, %v653
    %658 = vrot.lane.b32.xlu0 %v131, 104
    %v659 = vpop.permute.xlu0 %658
    %660 = vrot.lane.b32.xlu0 %v131, 72
    %v661 = vpop.permute.xlu0 %660
    %v663 = vsel %vm135, %v659, 0
    %v666 = vsel %vm135, %v661, 0
    %668 = vmatprep.subr.bf16.mxu0 0
    %669 = vmatpush1.bf16.xpose.msra.mxu0 %v666
    %670 = vmatprep.subr.bf16.mxu0 0
    %671 = vmatpush1.bf16.xpose.msra.mxu0 0
    %672 = vmatprep.subr.bf16.mxu0 0
    %673 = vmatpush1.bf16.xpose.msra.mxu0 0
    %674 = vmatprep.subr.bf16.mxu0 0
    %675 = vmatpush1.bf16.xpose.msra.mxu0 0
    %676 = vmatprep.subr.bf16.mxu0 0
    %677 = vmatpush1.bf16.xpose.msra.mxu0 0
    %678 = vmatprep.subr.bf16.mxu0 0
    %679 = vmatpush1.bf16.xpose.msra.mxu0 0
    %680 = vmatprep.subr.bf16.mxu0 0
    %681 = vmatpush1.bf16.xpose.msra.mxu0 0
    %682 = vmatprep.subr.bf16.mxu0 0
    %683 = vmatpush1.bf16.xpose.msra.mxu0 0
    %684 = vmatprep.subr.bf16.mxu0 0
    %685 = vmatpush1.bf16.xpose.msra.mxu0 0
    %686 = vmatprep.subr.bf16.mxu0 0
    %687 = vmatpush1.bf16.xpose.msra.mxu0 0
    %688 = vmatprep.subr.bf16.mxu0 0
    %689 = vmatpush1.bf16.xpose.msra.mxu0 0
    %690 = vmatprep.subr.bf16.mxu0 0
    %691 = vmatpush1.bf16.xpose.msra.mxu0 0
    %692 = vmatprep.subr.bf16.mxu0 0
    %693 = vmatpush1.bf16.xpose.msra.mxu0 0
    %694 = vmatprep.subr.bf16.mxu0 0
    %695 = vmatpush1.bf16.xpose.msra.mxu0 0
    %696 = vmatprep.subr.bf16.mxu0 0
    %697 = vmatpush1.bf16.xpose.msra.mxu0 0
    %698 = vmatprep.subr.bf16.mxu0 0
    %699 = vmatpush1.bf16.xpose.msra.mxu0 0
    %700 = vmatprep.mubr.bf16.mxu0 0
    %701 = vmatmul.mubr.bf16.gmra.mrb[0].mxu0 %v663
    %v702 = vpop.f32.mrb[0].mxu0
    %v703 = vadd.f32 0.0, %v702
    %v704 = vpop.f32.mrb[0].mxu0
    %v705 = vpop.f32.mrb[0].mxu0
    %v706 = vadd.f32 0.0, %v705
    %v707 = vpop.f32.mrb[0].mxu0
    %708 = vdwg.mxu0
    %v709 = vmul.f32 %v703, 0.35355338
    %v710 = vmul.f32 %v706, 0.35355338
    %v711 = vadd.f32 %v709, %v19
    %v712 = vadd.f32 %v710, %v20
    %v713 = vsel %vm187, %v711, -inf
    %714 = vmax.xlane.f32.xlu0 %v713
    %v715 = vpop.xlane.xlu0 %714
    %v716 = vsel %vm187, %v712, -inf
    %717 = vmax.xlane.f32.xlu0 %v716
    %v718 = vpop.xlane.xlu0 %717
    %v719 = vsub.f32 %v711, %v715
    %v720 = vsub.f32 %v712, %v718
    %v721 = vmul.f32 %v719, 1.442695
    %v722 = vpow.pop %v721
    %v723 = vmul.f32 %v720, 1.442695
    %v724 = vpow.pop %v723
    %v725 = vsel %vm187, %v722, 0.0
    %726 = vadd.xlane.f32.xlu0 %v725
    %v727 = vpop.xlane.xlu0 %726
    %v728 = vsel %vm187, %v724, 0.0
    %729 = vadd.xlane.f32.xlu0 %v728
    %v730 = vpop.xlane.xlu0 %729
    %v731 = vrcp.pop %v727
    %v732 = vrcp.pop %v730
    %v733 = vmul.f32 %v722, %v731
    %v734 = vmul.f32 %v724, %v732
    %v735 = vpack.c.bf16 %v734, %v733
    %736 = vrot.lane.b32.xlu0 %v131, 40
    %v737 = vpop.permute.xlu0 %736
    %v740 = vsel %vm187, %v735, 0
    %742 = vmatprep.subr.bf16.mxu0 0
    %743 = vmatpush1.bf16.msra.mxu0 %v737
    %744 = vmatprep.subr.bf16.mxu0 0
    %745 = vmatpush1.bf16.msra.mxu0 0
    %746 = vmatprep.subr.bf16.mxu0 0
    %747 = vmatpush1.bf16.msra.mxu0 0
    %748 = vmatprep.subr.bf16.mxu0 0
    %749 = vmatpush1.bf16.msra.mxu0 0
    %750 = vmatprep.subr.bf16.mxu0 0
    %751 = vmatpush1.bf16.msra.mxu0 0
    %752 = vmatprep.subr.bf16.mxu0 0
    %753 = vmatpush1.bf16.msra.mxu0 0
    %754 = vmatprep.subr.bf16.mxu0 0
    %755 = vmatpush1.bf16.msra.mxu0 0
    %756 = vmatprep.subr.bf16.mxu0 0
    %757 = vmatpush1.bf16.msra.mxu0 0
    %758 = vmatprep.subr.bf16.mxu0 0
    %759 = vmatpush1.bf16.msra.mxu0 0
    %760 = vmatprep.subr.bf16.mxu0 0
    %761 = vmatpush1.bf16.msra.mxu0 0
    %762 = vmatprep.subr.bf16.mxu0 0
    %763 = vmatpush1.bf16.msra.mxu0 0
    %764 = vmatprep.subr.bf16.mxu0 0
    %765 = vmatpush1.bf16.msra.mxu0 0
    %766 = vmatprep.subr.bf16.mxu0 0
    %767 = vmatpush1.bf16.msra.mxu0 0
    %768 = vmatprep.subr.bf16.mxu0 0
    %769 = vmatpush1.bf16.msra.mxu0 0
    %770 = vmatprep.subr.bf16.mxu0 0
    %771 = vmatpush1.bf16.msra.mxu0 0
    %772 = vmatprep.subr.bf16.mxu0 0
    %773 = vmatpush1.bf16.msra.mxu0 0
    %774 = vmatprep.mubr.bf16.mxu0 0
    %775 = vmatmul.mubr.bf16.gmra.mrb[0].mxu0 %v740
    %v776 = vpop.f32.mrb[0].mxu0
    %v777 = vadd.f32 0.0, %v776
    %v778 = vpop.f32.mrb[0].mxu0
    %v779 = vpop.f32.mrb[0].mxu0
    %v780 = vadd.f32 0.0, %v779
    %v781 = vpop.f32.mrb[0].mxu0
    %782 = vdwg.mxu0
    %v783 = vld [vmem:[%s2 + $0x2c] sm:$0xf]
    %v784 = vpack.c.bf16 %v780, %v777
    %v786 = vsel %vm135, %v784, 0
    %v789 = vsel %vm390, %v783, 0
    %791 = vmatprep.subr.bf16.mxu0 0
    %792 = vmatpush1.bf16.msra.mxu0 %v789
    %793 = vmatprep.subr.bf16.mxu0 0
    %794 = vmatpush1.bf16.msra.mxu0 0
    %795 = vmatprep.subr.bf16.mxu0 0
    %796 = vmatpush1.bf16.msra.mxu0 0
    %797 = vmatprep.subr.bf16.mxu0 0
    %798 = vmatpush1.bf16.msra.mxu0 0
    %799 = vmatprep.subr.bf16.mxu0 0
    %800 = vmatpush1.bf16.msra.mxu0 0
    %801 = vmatprep.subr.bf16.mxu0 0
    %802 = vmatpush1.bf16.msra.mxu0 0
    %803 = vmatprep.subr.bf16.mxu0 0
    %804 = vmatpush1.bf16.msra.mxu0 0
    %805 = vmatprep.subr.bf16.mxu0 0
    %806 = vmatpush1.bf16.msra.mxu0 0
    %807 = vmatprep.subr.bf16.mxu0 0
    %808 = vmatpush1.bf16.msra.mxu0 0
    %809 = vmatprep.subr.bf16.mxu0 0
    %810 = vmatpush1.bf16.msra.mxu0 0
    %811 = vmatprep.subr.bf16.mxu0 0
    %812 = vmatpush1.bf16.msra.mxu0 0
    %813 = vmatprep.subr.bf16.mxu0 0
    %814 = vmatpush1.bf16.msra.mxu0 0
    %815 = vmatprep.subr.bf16.mxu0 0
    %816 = vmatpush1.bf16.msra.mxu0 0
    %817 = vmatprep.subr.bf16.mxu0 0
    %818 = vmatpush1.bf16.msra.mxu0 0
    %819 = vmatprep.subr.bf16.mxu0 0
    %820 = vmatpush1.bf16.msra.mxu0 0
    %821 = vmatprep.subr.bf16.mxu0 0
    %822 = vmatpush1.bf16.msra.mxu0 0
    %823 = vmatprep.mubr.bf16.mxu0 0
    %824 = vmatmul.mubr.bf16.gmra.mrb[0].mxu0 %v786
    %v825 = vpop.f32.mrb[0].mxu0
    %v826 = vadd.f32 0.0, %v825
    %v827 = vpop.f32.mrb[0].mxu0
    %v828 = vpop.f32.mrb[0].mxu0
    %v829 = vadd.f32 0.0, %v828
    %v830 = vpop.f32.mrb[0].mxu0
    %831 = vdwg.mxu0
    %v832 = vadd.f32 %v656, %v826
    %v833 = vadd.f32 %v657, %v829
    %v834 = vld [vmem:[%s3 + $0x5] sm:$0x1]
    %v835 = vlaneseq
    %v836 = vshrl.u32 %v835, 7
    %v837 = vsub.s32 0, %v836
    %v838 = vrot.slane %v834, %v837
    %v839 = vadd.f32 %v832, %v838
    %v840 = vadd.f32 %v833, %v838
    %v841 = vadd.f32 %v839, %v63
    %v842 = vadd.f32 %v840, %v64
    %v843 = vld [vmem:[%s3 + $0x6] sm:$0x1]
    %v844 = vld [vmem:[%s3 + $0x7] sm:$0x1]
    %v845 = vsel %vm25, %v841, 0.0
    %846 = vadd.xlane.f32.xlu0 %v845
    %v847 = vpop.xlane.xlu0 %846
    %v848 = vsel %vm25, %v842, 0.0
    %849 = vadd.xlane.f32.xlu0 %v848
    %v850 = vpop.xlane.xlu0 %849
    %v851 = vmul.f32 %v847, %v32
    %v852 = vmul.f32 %v850, %v32
    %v853 = vsub.f32 %v841, %v851
    %v854 = vsub.f32 %v842, %v852
    %v855 = vmul.f32 %v853, %v853
    %v856 = vmul.f32 %v854, %v854
    %v857 = vsel %vm25, %v855, 0.0
    %858 = vadd.xlane.f32.xlu0 %v857
    %v859 = vpop.xlane.xlu0 %858
    %v860 = vsel %vm25, %v856, 0.0
    %861 = vadd.xlane.f32.xlu0 %v860
    %v862 = vpop.xlane.xlu0 %861
    %v863 = vmul.f32 %v859, %v32
    %v864 = vmul.f32 %v862, %v32
    %v865 = vadd.f32 %v863, 1e-12
    %v866 = vadd.f32 %v864, 1e-12
    %v867 = vrsqrt.pop %v865
    %v868 = vrsqrt.pop %v866
    %v869 = vmul.f32 %v853, %v867
    %v870 = vmul.f32 %v854, %v868
    %v871 = vlaneseq
    %v872 = vshrl.u32 %v871, 7
    %v873 = vsub.s32 0, %v872
    %v874 = vrot.slane %v843, %v873
    %v875 = vmul.f32 %v869, %v874
    %v876 = vmul.f32 %v870, %v874
    %v877 = vlaneseq
    %v878 = vshrl.u32 %v877, 7
    %v879 = vsub.s32 0, %v878
    %v880 = vrot.slane %v844, %v879
    %v881 = vadd.f32 %v875, %v880
    %v882 = vadd.f32 %v876, %v880
    %v883 = vpack.c.bf16 %v882, %v881
    %v884 = vld [vmem:[%s2 + $0x40] sm:$0xf]
    %v885 = vld [vmem:[%s2 + $0x44] sm:$0xf]
    %v886 = vld [vmem:[%s2 + $0x48] sm:$0xf]
    %v887 = vld [vmem:[%s2 + $0x4c] sm:$0xf]
    %v888 = vld [vmem:[%s3 + $0x8] sm:$0x1]
    %v889 = vlaneseq
    %v890 = vshrl.u32 %v889, 7
    %v891 = vsub.s32 0, %v890
    %v892 = vrot.slane %v888, %v891
    %v897 = vunpack.c.l.b16 %v884
    %v898 = vunpack.c.l.b16 %v885
    %v899 = vunpack.c.l.b16 %v886
    %v900 = vunpack.c.l.b16 %v887
    %v901 = vpack.c.b16 %v898, %v897
    %v902 = vpack.c.b16 %v900, %v899
    %v906 = vsel %vm25, %v883, 0
    %908 = vmatprep.subr.bf16.mxu0 0
    %909 = vmatpush1.bf16.msra.mxu0 %v901
    %910 = vmatprep.subr.bf16.mxu0 0
    %911 = vmatpush1.bf16.msra.mxu0 %v902
    %912 = vmatprep.subr.bf16.mxu0 0
    %913 = vmatpush1.bf16.msra.mxu0 0
    %914 = vmatprep.subr.bf16.mxu0 0
    %915 = vmatpush1.bf16.msra.mxu0 0
    %916 = vmatprep.subr.bf16.mxu0 0
    %917 = vmatpush1.bf16.msra.mxu0 0
    %918 = vmatprep.subr.bf16.mxu0 0
    %919 = vmatpush1.bf16.msra.mxu0 0
    %920 = vmatprep.subr.bf16.mxu0 0
    %921 = vmatpush1.bf16.msra.mxu0 0
    %922 = vmatprep.subr.bf16.mxu0 0
    %923 = vmatpush1.bf16.msra.mxu0 0
    %924 = vmatprep.subr.bf16.mxu0 0
    %925 = vmatpush1.bf16.msra.mxu0 0
    %926 = vmatprep.subr.bf16.mxu0 0
    %927 = vmatpush1.bf16.msra.mxu0 0
    %928 = vmatprep.subr.bf16.mxu0 0
    %929 = vmatpush1.bf16.msra.mxu0 0
    %930 = vmatprep.subr.bf16.mxu0 0
    %931 = vmatpush1.bf16.msra.mxu0 0
    %932 = vmatprep.subr.bf16.mxu0 0
    %933 = vmatpush1.bf16.msra.mxu0 0
    %934 = vmatprep.subr.bf16.mxu0 0
    %935 = vmatpush1.bf16.msra.mxu0 0
    %936 = vmatprep.subr.bf16.mxu0 0
    %937 = vmatpush1.bf16.msra.mxu0 0
    %938 = vmatprep.subr.bf16.mxu0 0
    %939 = vmatpush1.bf16.msra.mxu0 0
    %940 = vmatprep.mubr.bf16.mxu0 0
    %941 = vmatmul.mubr.bf16.gmra.mrb[0].mxu0 %v906
    %v942 = vpop.f32.mrb[0].mxu0
    %v943 = vadd.f32 %v892, %v942
    %v944 = vpop.f32.mrb[0].mxu0
    %v945 = vpop.f32.mrb[0].mxu0
    %v946 = vadd.f32 %v892, %v945
    %v947 = vpop.f32.mrb[0].mxu0
    %948 = vdwg.mxu0
    %v949 = vmul.f32 %v943, 0.5
    %v950 = vmul.f32 %v946, 0.5
    %v951 = vmul.f32 %v943, 0.044715
    %v952 = vmul.f32 %v946, 0.044715
    %v953 = vmul.f32 %v951, %v943
    %v954 = vmul.f32 %v952, %v946
    %v955 = vmul.f32 %v953, %v943
    %v956 = vmul.f32 %v954, %v946
    %v957 = vadd.f32 %v943, %v955
    %v958 = vadd.f32 %v946, %v956
    %v959 = vmul.f32 %v957, 0.7978846
    %v960 = vmul.f32 %v958, 0.7978846
    %v961 = vtanh.pop %v959
    %v962 = vtanh.pop %v960
    %v963 = vadd.f32 %v961, 1.0
    %v964 = vadd.f32 %v962, 1.0
    %v965 = vmul.f32 %v949, %v963
    %v966 = vmul.f32 %v950, %v964
    %v967 = vpack.c.bf16 %v966, %v965
    %v968 = vld [vmem:[%s2 + $0x60] sm:$0xf]
    %v969 = vld [vmem:[%s2 + $0x64] sm:$0xf]
    %v970 = vld [vmem:[%s2 + $0x68] sm:$0xf]
    %v971 = vld [vmem:[%s2 + $0x6c] sm:$0xf]
    %v972 = vld [vmem:[%s2 + $0x70] sm:$0xf]
    %v973 = vld [vmem:[%s2 + $0x74] sm:$0xf]
    %v974 = vld [vmem:[%s2 + $0x78] sm:$0xf]
    %v975 = vld [vmem:[%s2 + $0x7c] sm:$0xf]
    %v976 = vld [vmem:[%s3 + $0x9] sm:$0x1]
    %v977 = vlaneseq
    %v978 = vshrl.u32 %v977, 7
    %v979 = vsub.s32 0, %v978
    %v980 = vrot.slane %v976, %v979
    %v989 = vunpack.c.l.b16 %v968
    %v990 = vunpack.c.l.b16 %v969
    %v991 = vunpack.c.l.b16 %v970
    %v992 = vunpack.c.l.b16 %v971
    %v993 = vunpack.c.l.b16 %v972
    %v994 = vunpack.c.l.b16 %v973
    %v995 = vunpack.c.l.b16 %v974
    %v996 = vunpack.c.l.b16 %v975
    %v997 = vpack.c.b16 %v990, %v989
    %v998 = vpack.c.b16 %v992, %v991
    %v999 = vpack.c.b16 %v994, %v993
    %v1000 = vpack.c.b16 %v996, %v995
    %vm1005 = vcmask 523264
    %v1007 = vsel %vm1005, %v967, 0
    %1009 = vmatprep.subr.bf16.mxu0 0
    %1010 = vmatpush1.bf16.msra.mxu0 %v997
    %1011 = vmatprep.subr.bf16.mxu0 0
    %1012 = vmatpush1.bf16.msra.mxu0 %v998
    %1013 = vmatprep.subr.bf16.mxu0 0
    %1014 = vmatpush1.bf16.msra.mxu0 %v999
    %1015 = vmatprep.subr.bf16.mxu0 0
    %1016 = vmatpush1.bf16.msra.mxu0 %v1000
    %1017 = vmatprep.subr.bf16.mxu0 0
    %1018 = vmatpush1.bf16.msra.mxu0 0
    %1019 = vmatprep.subr.bf16.mxu0 0
    %1020 = vmatpush1.bf16.msra.mxu0 0
    %1021 = vmatprep.subr.bf16.mxu0 0
    %1022 = vmatpush1.bf16.msra.mxu0 0
    %1023 = vmatprep.subr.bf16.mxu0 0
    %1024 = vmatpush1.bf16.msra.mxu0 0
    %1025 = vmatprep.subr.bf16.mxu0 0
    %1026 = vmatpush1.bf16.msra.mxu0 0
    %1027 = vmatprep.subr.bf16.mxu0 0
    %1028 = vmatpush1.bf16.msra.mxu0 0
    %1029 = vmatprep.subr.bf16.mxu0 0
    %1030 = vmatpush1.bf16.msra.mxu0 0
    %1031 = vmatprep.subr.bf16.mxu0 0
    %1032 = vmatpush1.bf16.msra.mxu0 0
    %1033 = vmatprep.subr.bf16.mxu0 0
    %1034 = vmatpush1.bf16.msra.mxu0 0
    %1035 = vmatprep.subr.bf16.mxu0 0
    %1036 = vmatpush1.bf16.msra.mxu0 0
    %1037 = vmatprep.subr.bf16.mxu0 0
    %1038 = vmatpush1.bf16.msra.mxu0 0
    %1039 = vmatprep.subr.bf16.mxu0 0
    %1040 = vmatpush1.bf16.msra.mxu0 0
    %1041 = vmatprep.mubr.bf16.mxu0 0
    %1042 = vmatmul.mubr.bf16.gmra.mrb[0].mxu0 %v1007
    %v1043 = vpop.f32.mrb[0].mxu0
    %v1044 = vadd.f32 %v980, %v1043
    %v1045 = vpop.f32.mrb[0].mxu0
    %v1046 = vpop.f32.mrb[0].mxu0
    %v1047 = vadd.f32 %v980, %v1046
    %v1048 = vpop.f32.mrb[0].mxu0
    %1049 = vdwg.mxu0
    %v1050 = vadd.f32 %v1044, %v881
    %v1051 = vadd.f32 %v1047, %v882
    %v1052 = vld [vmem:[%s3 + $0xa] sm:$0x1]
    %v1053 = vld [vmem:[%s3 + $0xb] sm:$0x1]
    %v1054 = vsel %vm25, %v1050, 0.0
    %1055 = vadd.xlane.f32.xlu0 %v1054
    %v1056 = vpop.xlane.xlu0 %1055
    %v1057 = vsel %vm25, %v1051, 0.0
    %1058 = vadd.xlane.f32.xlu0 %v1057
    %v1059 = vpop.xlane.xlu0 %1058
    %v1060 = vmul.f32 %v1056, %v32
    %v1061 = vmul.f32 %v1059, %v32
    %v1062 = vsub.f32 %v1050, %v1060
    %v1063 = vsub.f32 %v1051, %v1061
    %v1064 = vmul.f32 %v1062, %v1062
    %v1065 = vmul.f32 %v1063, %v1063
    %v1066 = vsel %vm25, %v1064, 0.0
    %1067 = vadd.xlane.f32.xlu0 %v1066
    %v1068 = vpop.xlane.xlu0 %1067
    %v1069 = vsel %vm25, %v1065, 0.0
    %1070 = vadd.xlane.f32.xlu0 %v1069
    %v1071 = vpop.xlane.xlu0 %1070
    %v1072 = vmul.f32 %v1068, %v32
    %v1073 = vmul.f32 %v1071, %v32
    %v1074 = vadd.f32 %v1072, 1e-12
    %v1075 = vadd.f32 %v1073, 1e-12
    %v1076 = vrsqrt.pop %v1074
    %v1077 = vrsqrt.pop %v1075
    %v1078 = vmul.f32 %v1062, %v1076
    %v1079 = vmul.f32 %v1063, %v1077
    %v1080 = vlaneseq
    %v1081 = vshrl.u32 %v1080, 7
    %v1082 = vsub.s32 0, %v1081
    %v1083 = vrot.slane %v1052, %v1082
    %v1084 = vmul.f32 %v1078, %v1083
    %v1085 = vmul.f32 %v1079, %v1083
    %v1086 = vlaneseq
    %v1087 = vshrl.u32 %v1086, 7
    %v1088 = vsub.s32 0, %v1087
    %v1089 = vrot.slane %v1053, %v1088
    %v1090 = vadd.f32 %v1084, %v1089
    %v1091 = vadd.f32 %v1085, %v1089
    %v1092 = vpack.c.bf16 %v1091, %v1090
    %v1093 = vld [vmem:[%s2 + $0x10] sm:$0xf]
    %v1094 = vld [vmem:[%s2 + $0x14] sm:$0xf]
    %v1095 = vld [vmem:[%s2 + $0x18] sm:$0xf]
    %v1096 = vld [vmem:[%s2 + $0x1c] sm:$0xf]
    %v1097 = vld [vmem:[%s3 + $0xc] sm:$0x1]
    %v1098 = vlaneseq
    %v1099 = vshrl.u32 %v1098, 7
    %v1100 = vsub.s32 0, %v1099
    %v1101 = vrot.slane %v1097, %v1100
    %v1106 = vunpack.c.l.b16 %v1093
    %v1107 = vunpack.c.l.b16 %v1094
    %v1108 = vunpack.c.l.b16 %v1095
    %v1109 = vunpack.c.l.b16 %v1096
    %v1110 = vpack.c.b16 %v1107, %v1106
    %v1111 = vpack.c.b16 %v1109, %v1108
    %v1115 = vsel %vm25, %v1092, 0
    %1117 = vmatprep.subr.bf16.mxu0 0
    %1118 = vmatpush1.bf16.msra.mxu0 %v1110
    %1119 = vmatprep.subr.bf16.mxu0 0
    %1120 = vmatpush1.bf16.msra.mxu0 %v1111
    %1121 = vmatprep.subr.bf16.mxu0 0
    %1122 = vmatpush1.bf16.msra.mxu0 0
    %1123 = vmatprep.subr.bf16.mxu0 0
    %1124 = vmatpush1.bf16.msra.mxu0 0
    %1125 = vmatprep.subr.bf16.mxu0 0
    %1126 = vmatpush1.bf16.msra.mxu0 0
    %1127 = vmatprep.subr.bf16.mxu0 0
    %1128 = vmatpush1.bf16.msra.mxu0 0
    %1129 = vmatprep.subr.bf16.mxu0 0
    %1130 = vmatpush1.bf16.msra.mxu0 0
    %1131 = vmatprep.subr.bf16.mxu0 0
    %1132 = vmatpush1.bf16.msra.mxu0 0
    %1133 = vmatprep.subr.bf16.mxu0 0
    %1134 = vmatpush1.bf16.msra.mxu0 0
    %1135 = vmatprep.subr.bf16.mxu0 0
    %1136 = vmatpush1.bf16.msra.mxu0 0
    %1137 = vmatprep.subr.bf16.mxu0 0
    %1138 = vmatpush1.bf16.msra.mxu0 0
    %1139 = vmatprep.subr.bf16.mxu0 0
    %1140 = vmatpush1.bf16.msra.mxu0 0
    %1141 = vmatprep.subr.bf16.mxu0 0
    %1142 = vmatpush1.bf16.msra.mxu0 0
    %1143 = vmatprep.subr.bf16.mxu0 0
    %1144 = vmatpush1.bf16.msra.mxu0 0
    %1145 = vmatprep.subr.bf16.mxu0 0
    %1146 = vmatpush1.bf16.msra.mxu0 0
    %1147 = vmatprep.subr.bf16.mxu0 0
    %1148 = vmatpush1.bf16.msra.mxu0 0
    %1149 = vmatprep.mubr.bf16.mxu0 0
    %1150 = vmatmul.mubr.bf16.gmra.mrb[0].mxu0 %v1115
    %v1151 = vpop.f32.mrb[0].mxu0
    %v1152 = vadd.f32 %v1101, %v1151
    %v1153 = vpop.f32.mrb[0].mxu0
    %v1154 = vpop.f32.mrb[0].mxu0
    %v1155 = vadd.f32 %v1101, %v1154
    %v1156 = vpop.f32.mrb[0].mxu0
    %1157 = vdwg.mxu0
    %v1158 = vpack.c.bf16 %v1155, %v1152
    %1160 = vrot.lane.b32.xlu0 %v1158, 96
    %v1161 = vpop.permute.xlu0 %1160
    %v1163 = vsel %vm135, %v1158, 0
    %v1166 = vsel %vm135, %v1161, 0
    %1168 = vmatprep.subr.bf16.mxu0 0
    %1169 = vmatpush1.bf16.xpose.msra.mxu0 %v1166
    %1170 = vmatprep.subr.bf16.mxu0 0
    %1171 = vmatpush1.bf16.xpose.msra.mxu0 0
    %1172 = vmatprep.subr.bf16.mxu0 0
    %1173 = vmatpush1.bf16.xpose.msra.mxu0 0
    %1174 = vmatprep.subr.bf16.mxu0 0
    %1175 = vmatpush1.bf16.xpose.msra.mxu0 0
    %1176 = vmatprep.subr.bf16.mxu0 0
    %1177 = vmatpush1.bf16.xpose.msra.mxu0 0
    %1178 = vmatprep.subr.bf16.mxu0 0
    %1179 = vmatpush1.bf16.xpose.msra.mxu0 0
    %1180 = vmatprep.subr.bf16.mxu0 0
    %1181 = vmatpush1.bf16.xpose.msra.mxu0 0
    %1182 = vmatprep.subr.bf16.mxu0 0
    %1183 = vmatpush1.bf16.xpose.msra.mxu0 0
    %1184 = vmatprep.subr.bf16.mxu0 0
    %1185 = vmatpush1.bf16.xpose.msra.mxu0 0
    %1186 = vmatprep.subr.bf16.mxu0 0
    %1187 = vmatpush1.bf16.xpose.msra.mxu0 0
    %1188 = vmatprep.subr.bf16.mxu0 0
    %1189 = vmatpush1.bf16.xpose.msra.mxu0 0
    %1190 = vmatprep.subr.bf16.mxu0 0
    %1191 = vmatpush1.bf16.xpose.msra.mxu0 0
    %1192 = vmatprep.subr.bf16.mxu0 0
    %1193 = vmatpush1.bf16.xpose.msra.mxu0 0
    %1194 = vmatprep.subr.bf16.mxu0 0
    %1195 = vmatpush1.bf16.xpose.msra.mxu0 0
    %1196 = vmatprep.subr.bf16.mxu0 0
    %1197 = vmatpush1.bf16.xpose.msra.mxu0 0
    %1198 = vmatprep.subr.bf16.mxu0 0
    %1199 = vmatpush1.bf16.xpose.msra.mxu0 0
    %1200 = vmatprep.mubr.bf16.mxu0 0
    %1201 = vmatmul.mubr.bf16.gmra.mrb[0].mxu0 %v1163
    %v1202 = vpop.f32.mrb[0].mxu0
    %v1203 = vadd.f32 0.0, %v1202
    %v1204 = vpop.f32.mrb[0].mxu0
    %v1205 = vpop.f32.mrb[0].mxu0
    %v1206 = vadd.f32 0.0, %v1205
    %v1207 = vpop.f32.mrb[0].mxu0
    %1208 = vdwg.mxu0
    %v1209 = vmul.f32 %v1203, 0.35355338
    %v1210 = vmul.f32 %v1206, 0.35355338
    %v1211 = vadd.f32 %v1209, %v19
    %v1212 = vadd.f32 %v1210, %v20
    %v1213 = vsel %vm187, %v1211, -inf
    %1214 = vmax.xlane.f32.xlu0 %v1213
    %v1215 = vpop.xlane.xlu0 %1214
    %v1216 = vsel %vm187, %v1212, -inf
    %1217 = vmax.xlane.f32.xlu0 %v1216
    %v1218 = vpop.xlane.xlu0 %1217
    %v1219 = vsub.f32 %v1211, %v1215
    %v1220 = vsub.f32 %v1212, %v1218
    %v1221 = vmul.f32 %v1219, 1.442695
    %v1222 = vpow.pop %v1221
    %v1223 = vmul.f32 %v1220, 1.442695
    %v1224 = vpow.pop %v1223
    %v1225 = vsel %vm187, %v1222, 0.0
    %1226 = vadd.xlane.f32.xlu0 %v1225
    %v1227 = vpop.xlane.xlu0 %1226
    %v1228 = vsel %vm187, %v1224, 0.0
    %1229 = vadd.xlane.f32.xlu0 %v1228
    %v1230 = vpop.xlane.xlu0 %1229
    %v1231 = vrcp.pop %v1227
    %v1232 = vrcp.pop %v1230
    %v1233 = vmul.f32 %v1222, %v1231
    %v1234 = vmul.f32 %v1224, %v1232
    %v1235 = vpack.c.bf16 %v1234, %v1233
    %1236 = vrot.lane.b32.xlu0 %v1158, 64
    %v1237 = vpop.permute.xlu0 %1236
    %v1240 = vsel %vm187, %v1235, 0
    %1242 = vmatprep.subr.bf16.mxu0 0
    %1243 = vmatpush1.bf16.msra.mxu0 %v1237
    %1244 = vmatprep.subr.bf16.mxu0 0
    %1245 = vmatpush1.bf16.msra.mxu0 0
    %1246 = vmatprep.subr.bf16.mxu0 0
    %1247 = vmatpush1.bf16.msra.mxu0 0
    %1248 = vmatprep.subr.bf16.mxu0 0
    %1249 = vmatpush1.bf16.msra.mxu0 0
    %1250 = vmatprep.subr.bf16.mxu0 0
    %1251 = vmatpush1.bf16.msra.mxu0 0
    %1252 = vmatprep.subr.bf16.mxu0 0
    %1253 = vmatpush1.bf16.msra.mxu0 0
    %1254 = vmatprep.subr.bf16.mxu0 0
    %1255 = vmatpush1.bf16.msra.mxu0 0
    %1256 = vmatprep.subr.bf16.mxu0 0
    %1257 = vmatpush1.bf16.msra.mxu0 0
    %1258 = vmatprep.subr.bf16.mxu0 0
    %1259 = vmatpush1.bf16.msra.mxu0 0
    %1260 = vmatprep.subr.bf16.mxu0 0
    %1261 = vmatpush1.bf16.msra.mxu0 0
    %1262 = vmatprep.subr.bf16.mxu0 0
    %1263 = vmatpush1.bf16.msra.mxu0 0
    %1264 = vmatprep.subr.bf16.mxu0 0
    %1265 = vmatpush1.bf16.msra.mxu0 0
    %1266 = vmatprep.subr.bf16.mxu0 0
    %1267 = vmatpush1.bf16.msra.mxu0 0
    %1268 = vmatprep.subr.bf16.mxu0 0
    %1269 = vmatpush1.bf16.msra.mxu0 0
    %1270 = vmatprep.subr.bf16.mxu0 0
    %1271 = vmatpush1.bf16.msra.mxu0 0
    %1272 = vmatprep.subr.bf16.mxu0 0
    %1273 = vmatpush1.bf16.msra.mxu0 0
    %1274 = vmatprep.mubr.bf16.mxu0 0
    %1275 = vmatmul.mubr.bf16.gmra.mrb[0].mxu0 %v1240
    %v1276 = vpop.f32.mrb[0].mxu0
    %v1277 = vadd.f32 0.0, %v1276
    %v1278 = vpop.f32.mrb[0].mxu0
    %v1279 = vpop.f32.mrb[0].mxu0
    %v1280 = vadd.f32 0.0, %v1279
    %v1281 = vpop.f32.mrb[0].mxu0
    %1282 = vdwg.mxu0
    %v1283 = vld [vmem:[%s2 + $0x30] sm:$0xf]
    %v1284 = vpack.c.bf16 %v1280, %v1277
    %1285 = vrot.lane.b32.xlu0 %v1158, 120
    %v1286 = vpop.permute.xlu0 %1285
    %1287 = vrot.lane.b32.xlu0 %v1158, 88
    %v1288 = vpop.permute.xlu0 %1287
    %v1290 = vsel %vm135, %v1286, 0
    %v1293 = vsel %vm135, %v1288, 0
    %1295 = vmatprep.subr.bf16.mxu0 0
    %1296 = vmatpush1.bf16.xpose.msra.mxu0 %v1293
    %1297 = vmatprep.subr.bf16.mxu0 0
    %1298 = vmatpush1.bf16.xpose.msra.mxu0 0
    %1299 = vmatprep.subr.bf16.mxu0 0
    %1300 = vmatpush1.bf16.xpose.msra.mxu0 0
    %1301 = vmatprep.subr.bf16.mxu0 0
    %1302 = vmatpush1.bf16.xpose.msra.mxu0 0
    %1303 = vmatprep.subr.bf16.mxu0 0
    %1304 = vmatpush1.bf16.xpose.msra.mxu0 0
    %1305 = vmatprep.subr.bf16.mxu0 0
    %1306 = vmatpush1.bf16.xpose.msra.mxu0 0
    %1307 = vmatprep.subr.bf16.mxu0 0
    %1308 = vmatpush1.bf16.xpose.msra.mxu0 0
    %1309 = vmatprep.subr.bf16.mxu0 0
    %1310 = vmatpush1.bf16.xpose.msra.mxu0 0
    %1311 = vmatprep.subr.bf16.mxu0 0
    %1312 = vmatpush1.bf16.xpose.msra.mxu0 0
    %1313 = vmatprep.subr.bf16.mxu0 0
    %1314 = vmatpush1.bf16.xpose.msra.mxu0 0
    %1315 = vmatprep.subr.bf16.mxu0 0
    %1316 = vmatpush1.bf16.xpose.msra.mxu0 0
    %1317 = vmatprep.subr.bf16.mxu0 0
    %1318 = vmatpush1.bf16.xpose.msra.mxu0 0
    %1319 = vmatprep.subr.bf16.mxu0 0
    %1320 = vmatpush1.bf16.xpose.msra.mxu0 0
    %1321 = vmatprep.subr.bf16.mxu0 0
    %1322 = vmatpush1.bf16.xpose.msra.mxu0 0
    %1323 = vmatprep.subr.bf16.mxu0 0
    %1324 = vmatpush1.bf16.xpose.msra.mxu0 0
    %1325 = vmatprep.subr.bf16.mxu0 0
    %1326 = vmatpush1.bf16.xpose.msra.mxu0 0
    %1327 = vmatprep.mubr.bf16.mxu0 0
    %1328 = vmatmul.mubr.bf16.gmra.mrb[0].mxu0 %v1290
    %v1329 = vpop.f32.mrb[0].mxu0
    %v1330 = vadd.f32 0.0, %v1329
    %v1331 = vpop.f32.mrb[0].mxu0
    %v1332 = vpop.f32.mrb[0].mxu0
    %v1333 = vadd.f32 0.0, %v1332
    %v1334 = vpop.f32.mrb[0].mxu0
    %1335 = vdwg.mxu0
    %v1336 = vmul.f32 %v1330, 0.35355338
    %v1337 = vmul.f32 %v1333, 0.35355338
    %v1338 = vadd.f32 %v1336, %v19
    %v1339 = vadd.f32 %v1337, %v20
    %v1340 = vsel %vm187, %v1338, -inf
    %1341 = vmax.xlane.f32.xlu0 %v1340
    %v1342 = vpop.xlane.xlu0 %1341
    %v1343 = vsel %vm187, %v1339, -inf
    %1344 = vmax.xlane.f32.xlu0 %v1343
    %v1345 = vpop.xlane.xlu0 %1344
    %v1346 = vsub.f32 %v1338, %v1342
    %v1347 = vsub.f32 %v1339, %v1345
    %v1348 = vmul.f32 %v1346, 1.442695
    %v1349 = vpow.pop %v1348
    %v1350 = vmul.f32 %v1347, 1.442695
    %v1351 = vpow.pop %v1350
    %v1352 = vsel %vm187, %v1349, 0.0
    %1353 = vadd.xlane.f32.xlu0 %v1352
    %v1354 = vpop.xlane.xlu0 %1353
    %v1355 = vsel %vm187, %v1351, 0.0
    %1356 = vadd.xlane.f32.xlu0 %v1355
    %v1357 = vpop.xlane.xlu0 %1356
    %v1358 = vrcp.pop %v1354
    %v1359 = vrcp.pop %v1357
    %v1360 = vmul.f32 %v1349, %v1358
    %v1361 = vmul.f32 %v1351, %v1359
    %v1362 = vpack.c.bf16 %v1361, %v1360
    %1363 = vrot.lane.b32.xlu0 %v1158, 56
    %v1364 = vpop.permute.xlu0 %1363
    %v1367 = vsel %vm187, %v1362, 0
    %1369 = vmatprep.subr.bf16.mxu0 0
    %1370 = vmatpush1.bf16.msra.mxu0 %v1364
    %1371 = vmatprep.subr.bf16.mxu0 0
    %1372 = vmatpush1.bf16.msra.mxu0 0
    %1373 = vmatprep.subr.bf16.mxu0 0
    %1374 = vmatpush1.bf16.msra.mxu0 0
    %1375 = vmatprep.subr.bf16.mxu0 0
    %1376 = vmatpush1.bf16.msra.mxu0 0
    %1377 = vmatprep.subr.bf16.mxu0 0
    %1378 = vmatpush1.bf16.msra.mxu0 0
    %1379 = vmatprep.subr.bf16.mxu0 0
    %1380 = vmatpush1.bf16.msra.mxu0 0
    %1381 = vmatprep.subr.bf16.mxu0 0
    %1382 = vmatpush1.bf16.msra.mxu0 0
    %1383 = vmatprep.subr.bf16.mxu0 0
    %1384 = vmatpush1.bf16.msra.mxu0 0
    %1385 = vmatprep.subr.bf16.mxu0 0
    %1386 = vmatpush1.bf16.msra.mxu0 0
    %1387 = vmatprep.subr.bf16.mxu0 0
    %1388 = vmatpush1.bf16.msra.mxu0 0
    %1389 = vmatprep.subr.bf16.mxu0 0
    %1390 = vmatpush1.bf16.msra.mxu0 0
    %1391 = vmatprep.subr.bf16.mxu0 0
    %1392 = vmatpush1.bf16.msra.mxu0 0
    %1393 = vmatprep.subr.bf16.mxu0 0
    %1394 = vmatpush1.bf16.msra.mxu0 0
    %1395 = vmatprep.subr.bf16.mxu0 0
    %1396 = vmatpush1.bf16.msra.mxu0 0
    %1397 = vmatprep.subr.bf16.mxu0 0
    %1398 = vmatpush1.bf16.msra.mxu0 0
    %1399 = vmatprep.subr.bf16.mxu0 0
    %1400 = vmatpush1.bf16.msra.mxu0 0
    %1401 = vmatprep.mubr.bf16.mxu0 0
    %1402 = vmatmul.mubr.bf16.gmra.mrb[0].mxu0 %v1367
    %v1403 = vpop.f32.mrb[0].mxu0
    %v1404 = vadd.f32 0.0, %v1403
    %v1405 = vpop.f32.mrb[0].mxu0
    %v1406 = vpop.f32.mrb[0].mxu0
    %v1407 = vadd.f32 0.0, %v1406
    %v1408 = vpop.f32.mrb[0].mxu0
    %1409 = vdwg.mxu0
    %v1410 = vld [vmem:[%s2 + $0x34] sm:$0xf]
    %v1411 = vpack.c.bf16 %v1407, %v1404
    %v1413 = vsel %vm135, %v1411, 0
    %v1416 = vsel %vm390, %v1410, 0
    %1418 = vmatprep.subr.bf16.mxu0 0
    %1419 = vmatpush1.bf16.msra.mxu0 %v1416
    %1420 = vmatprep.subr.bf16.mxu0 0
    %1421 = vmatpush1.bf16.msra.mxu0 0
    %1422 = vmatprep.subr.bf16.mxu0 0
    %1423 = vmatpush1.bf16.msra.mxu0 0
    %1424 = vmatprep.subr.bf16.mxu0 0
    %1425 = vmatpush1.bf16.msra.mxu0 0
    %1426 = vmatprep.subr.bf16.mxu0 0
    %1427 = vmatpush1.bf16.msra.mxu0 0
    %1428 = vmatprep.subr.bf16.mxu0 0
    %1429 = vmatpush1.bf16.msra.mxu0 0
    %1430 = vmatprep.subr.bf16.mxu0 0
    %1431 = vmatpush1.bf16.msra.mxu0 0
    %1432 = vmatprep.subr.bf16.mxu0 0
    %1433 = vmatpush1.bf16.msra.mxu0 0
    %1434 = vmatprep.subr.bf16.mxu0 0
    %1435 = vmatpush1.bf16.msra.mxu0 0
    %1436 = vmatprep.subr.bf16.mxu0 0
    %1437 = vmatpush1.bf16.msra.mxu0 0
    %1438 = vmatprep.subr.bf16.mxu0 0
    %1439 = vmatpush1.bf16.msra.mxu0 0
    %1440 = vmatprep.subr.bf16.mxu0 0
    %1441 = vmatpush1.bf16.msra.mxu0 0
    %1442 = vmatprep.subr.bf16.mxu0 0
    %1443 = vmatpush1.bf16.msra.mxu0 0
    %1444 = vmatprep.subr.bf16.mxu0 0
    %1445 = vmatpush1.bf16.msra.mxu0 0
    %1446 = vmatprep.subr.bf16.mxu0 0
    %1447 = vmatpush1.bf16.msra.mxu0 0
    %1448 = vmatprep.subr.bf16.mxu0 0
    %1449 = vmatpush1.bf16.msra.mxu0 0
    %1450 = vmatprep.mubr.bf16.mxu0 0
    %1451 = vmatmul.mubr.bf16.gmra.mrb[0].mxu0 %v1413
    %v1452 = vpop.f32.mrb[0].mxu0
    %v1453 = vadd.f32 0.0, %v1452
    %v1454 = vpop.f32.mrb[0].mxu0
    %v1455 = vpop.f32.mrb[0].mxu0
    %v1456 = vadd.f32 0.0, %v1455
    %v1457 = vpop.f32.mrb[0].mxu0
    %1458 = vdwg.mxu0
    %v1460 = vsel %vm135, %v1284, 0
    %v1463 = vsel %vm390, %v1283, 0
    %1465 = vmatprep.subr.bf16.mxu0 0
    %1466 = vmatpush1.bf16.msra.mxu0 %v1463
    %1467 = vmatprep.subr.bf16.mxu0 0
    %1468 = vmatpush1.bf16.msra.mxu0 0
    %1469 = vmatprep.subr.bf16.mxu0 0
    %1470 = vmatpush1.bf16.msra.mxu0 0
    %1471 = vmatprep.subr.bf16.mxu0 0
    %1472 = vmatpush1.bf16.msra.mxu0 0
    %1473 = vmatprep.subr.bf16.mxu0 0
    %1474 = vmatpush1.bf16.msra.mxu0 0
    %1475 = vmatprep.subr.bf16.mxu0 0
    %1476 = vmatpush1.bf16.msra.mxu0 0
    %1477 = vmatprep.subr.bf16.mxu0 0
    %1478 = vmatpush1.bf16.msra.mxu0 0
    %1479 = vmatprep.subr.bf16.mxu0 0
    %1480 = vmatpush1.bf16.msra.mxu0 0
    %1481 = vmatprep.subr.bf16.mxu0 0
    %1482 = vmatpush1.bf16.msra.mxu0 0
    %1483 = vmatprep.subr.bf16.mxu0 0
    %1484 = vmatpush1.bf16.msra.mxu0 0
    %1485 = vmatprep.subr.bf16.mxu0 0
    %1486 = vmatpush1.bf16.msra.mxu0 0
    %1487 = vmatprep.subr.bf16.mxu0 0
    %1488 = vmatpush1.bf16.msra.mxu0 0
    %1489 = vmatprep.subr.bf16.mxu0 0
    %1490 = vmatpush1.bf16.msra.mxu0 0
    %1491 = vmatprep.subr.bf16.mxu0 0
    %1492 = vmatpush1.bf16.msra.mxu0 0
    %1493 = vmatprep.subr.bf16.mxu0 0
    %1494 = vmatpush1.bf16.msra.mxu0 0
    %1495 = vmatprep.subr.bf16.mxu0 0
    %1496 = vmatpush1.bf16.msra.mxu0 0
    %1497 = vmatprep.mubr.bf16.mxu0 0
    %1498 = vmatmul.mubr.bf16.gmra.mrb[0].mxu0 %v1460
    %v1499 = vpop.f32.mrb[0].mxu0
    %v1500 = vadd.f32 %v1453, %v1499
    %v1501 = vpop.f32.mrb[0].mxu0
    %v1502 = vpop.f32.mrb[0].mxu0
    %v1503 = vadd.f32 %v1456, %v1502
    %v1504 = vpop.f32.mrb[0].mxu0
    %1505 = vdwg.mxu0
    %1506 = vrot.lane.b32.xlu0 %v1158, 112
    %v1507 = vpop.permute.xlu0 %1506
    %1508 = vrot.lane.b32.xlu0 %v1158, 80
    %v1509 = vpop.permute.xlu0 %1508
    %v1511 = vsel %vm135, %v1507, 0
    %v1514 = vsel %vm135, %v1509, 0
    %1516 = vmatprep.subr.bf16.mxu0 0
    %1517 = vmatpush1.bf16.xpose.msra.mxu0 %v1514
    %1518 = vmatprep.subr.bf16.mxu0 0
    %1519 = vmatpush1.bf16.xpose.msra.mxu0 0
    %1520 = vmatprep.subr.bf16.mxu0 0
    %1521 = vmatpush1.bf16.xpose.msra.mxu0 0
    %1522 = vmatprep.subr.bf16.mxu0 0
    %1523 = vmatpush1.bf16.xpose.msra.mxu0 0
    %1524 = vmatprep.subr.bf16.mxu0 0
    %1525 = vmatpush1.bf16.xpose.msra.mxu0 0
    %1526 = vmatprep.subr.bf16.mxu0 0
    %1527 = vmatpush1.bf16.xpose.msra.mxu0 0
    %1528 = vmatprep.subr.bf16.mxu0 0
    %1529 = vmatpush1.bf16.xpose.msra.mxu0 0
    %1530 = vmatprep.subr.bf16.mxu0 0
    %1531 = vmatpush1.bf16.xpose.msra.mxu0 0
    %1532 = vmatprep.subr.bf16.mxu0 0
    %1533 = vmatpush1.bf16.xpose.msra.mxu0 0
    %1534 = vmatprep.subr.bf16.mxu0 0
    %1535 = vmatpush1.bf16.xpose.msra.mxu0 0
    %1536 = vmatprep.subr.bf16.mxu0 0
    %1537 = vmatpush1.bf16.xpose.msra.mxu0 0
    %1538 = vmatprep.subr.bf16.mxu0 0
    %1539 = vmatpush1.bf16.xpose.msra.mxu0 0
    %1540 = vmatprep.subr.bf16.mxu0 0
    %1541 = vmatpush1.bf16.xpose.msra.mxu0 0
    %1542 = vmatprep.subr.bf16.mxu0 0
    %1543 = vmatpush1.bf16.xpose.msra.mxu0 0
    %1544 = vmatprep.subr.bf16.mxu0 0
    %1545 = vmatpush1.bf16.xpose.msra.mxu0 0
    %1546 = vmatprep.subr.bf16.mxu0 0
    %1547 = vmatpush1.bf16.xpose.msra.mxu0 0
    %1548 = vmatprep.mubr.bf16.mxu0 0
    %1549 = vmatmul.mubr.bf16.gmra.mrb[0].mxu0 %v1511
    %v1550 = vpop.f32.mrb[0].mxu0
    %v1551 = vadd.f32 0.0, %v1550
    %v1552 = vpop.f32.mrb[0].mxu0
    %v1553 = vpop.f32.mrb[0].mxu0
    %v1554 = vadd.f32 0.0, %v1553
    %v1555 = vpop.f32.mrb[0].mxu0
    %1556 = vdwg.mxu0
    %v1557 = vmul.f32 %v1551, 0.35355338
    %v1558 = vmul.f32 %v1554, 0.35355338
    %v1559 = vadd.f32 %v1557, %v19
    %v1560 = vadd.f32 %v1558, %v20
    %v1561 = vsel %vm187, %v1559, -inf
    %1562 = vmax.xlane.f32.xlu0 %v1561
    %v1563 = vpop.xlane.xlu0 %1562
    %v1564 = vsel %vm187, %v1560, -inf
    %1565 = vmax.xlane.f32.xlu0 %v1564
    %v1566 = vpop.xlane.xlu0 %1565
    %v1567 = vsub.f32 %v1559, %v1563
    %v1568 = vsub.f32 %v1560, %v1566
    %v1569 = vmul.f32 %v1567, 1.442695
    %v1570 = vpow.pop %v1569
    %v1571 = vmul.f32 %v1568, 1.442695
    %v1572 = vpow.pop %v1571
    %v1573 = vsel %vm187, %v1570, 0.0
    %1574 = vadd.xlane.f32.xlu0 %v1573
    %v1575 = vpop.xlane.xlu0 %1574
    %v1576 = vsel %vm187, %v1572, 0.0
    %1577 = vadd.xlane.f32.xlu0 %v1576
    %v1578 = vpop.xlane.xlu0 %1577
    %v1579 = vrcp.pop %v1575
    %v1580 = vrcp.pop %v1578
    %v1581 = vmul.f32 %v1570, %v1579
    %v1582 = vmul.f32 %v1572, %v1580
    %v1583 = vpack.c.bf16 %v1582, %v1581
    %1584 = vrot.lane.b32.xlu0 %v1158, 48
    %v1585 = vpop.permute.xlu0 %1584
    %v1588 = vsel %vm187, %v1583, 0
    %1590 = vmatprep.subr.bf16.mxu0 0
    %1591 = vmatpush1.bf16.msra.mxu0 %v1585
    %1592 = vmatprep.subr.bf16.mxu0 0
    %1593 = vmatpush1.bf16.msra.mxu0 0
    %1594 = vmatprep.subr.bf16.mxu0 0
    %1595 = vmatpush1.bf16.msra.mxu0 0
    %1596 = vmatprep.subr.bf16.mxu0 0
    %1597 = vmatpush1.bf16.msra.mxu0 0
    %1598 = vmatprep.subr.bf16.mxu0 0
    %1599 = vmatpush1.bf16.msra.mxu0 0
    %1600 = vmatprep.subr.bf16.mxu0 0
    %1601 = vmatpush1.bf16.msra.mxu0 0
    %1602 = vmatprep.subr.bf16.mxu0 0
    %1603 = vmatpush1.bf16.msra.mxu0 0
    %1604 = vmatprep.subr.bf16.mxu0 0
    %1605 = vmatpush1.bf16.msra.mxu0 0
    %1606 = vmatprep.subr.bf16.mxu0 0
    %1607 = vmatpush1.bf16.msra.mxu0 0
    %1608 = vmatprep.subr.bf16.mxu0 0
    %1609 = vmatpush1.bf16.msra.mxu0 0
    %1610 = vmatprep.subr.bf16.mxu0 0
    %1611 = vmatpush1.bf16.msra.mxu0 0
    %1612 = vmatprep.subr.bf16.mxu0 0
    %1613 = vmatpush1.bf16.msra.mxu0 0
    %1614 = vmatprep.subr.bf16.mxu0 0
    %1615 = vmatpush1.bf16.msra.mxu0 0
    %1616 = vmatprep.subr.bf16.mxu0 0
    %1617 = vmatpush1.bf16.msra.mxu0 0
    %1618 = vmatprep.subr.bf16.mxu0 0
    %1619 = vmatpush1.bf16.msra.mxu0 0
    %1620 = vmatprep.subr.bf16.mxu0 0
    %1621 = vmatpush1.bf16.msra.mxu0 0
    %1622 = vmatprep.mubr.bf16.mxu0 0
    %1623 = vmatmul.mubr.bf16.gmra.mrb[0].mxu0 %v1588
    %v1624 = vpop.f32.mrb[0].mxu0
    %v1625 = vadd.f32 0.0, %v1624
    %v1626 = vpop.f32.mrb[0].mxu0
    %v1627 = vpop.f32.mrb[0].mxu0
    %v1628 = vadd.f32 0.0, %v1627
    %v1629 = vpop.f32.mrb[0].mxu0
    %1630 = vdwg.mxu0
    %v1631 = vld [vmem:[%s2 + $0x38] sm:$0xf]
    %v1632 = vpack.c.bf16 %v1628, %v1625
    %v1634 = vsel %vm135, %v1632, 0
    %v1637 = vsel %vm390, %v1631, 0
    %1639 = vmatprep.subr.bf16.mxu0 0
    %1640 = vmatpush1.bf16.msra.mxu0 %v1637
    %1641 = vmatprep.subr.bf16.mxu0 0
    %1642 = vmatpush1.bf16.msra.mxu0 0
    %1643 = vmatprep.subr.bf16.mxu0 0
    %1644 = vmatpush1.bf16.msra.mxu0 0
    %1645 = vmatprep.subr.bf16.mxu0 0
    %1646 = vmatpush1.bf16.msra.mxu0 0
    %1647 = vmatprep.subr.bf16.mxu0 0
    %1648 = vmatpush1.bf16.msra.mxu0 0
    %1649 = vmatprep.subr.bf16.mxu0 0
    %1650 = vmatpush1.bf16.msra.mxu0 0
    %1651 = vmatprep.subr.bf16.mxu0 0
    %1652 = vmatpush1.bf16.msra.mxu0 0
    %1653 = vmatprep.subr.bf16.mxu0 0
    %1654 = vmatpush1.bf16.msra.mxu0 0
    %1655 = vmatprep.subr.bf16.mxu0 0
    %1656 = vmatpush1.bf16.msra.mxu0 0
    %1657 = vmatprep.subr.bf16.mxu0 0
    %1658 = vmatpush1.bf16.msra.mxu0 0
    %1659 = vmatprep.subr.bf16.mxu0 0
    %1660 = vmatpush1.bf16.msra.mxu0 0
    %1661 = vmatprep.subr.bf16.mxu0 0
    %1662 = vmatpush1.bf16.msra.mxu0 0
    %1663 = vmatprep.subr.bf16.mxu0 0
    %1664 = vmatpush1.bf16.msra.mxu0 0
    %1665 = vmatprep.subr.bf16.mxu0 0
    %1666 = vmatpush1.bf16.msra.mxu0 0
    %1667 = vmatprep.subr.bf16.mxu0 0
    %1668 = vmatpush1.bf16.msra.mxu0 0
    %1669 = vmatprep.subr.bf16.mxu0 0
    %1670 = vmatpush1.bf16.msra.mxu0 0
    %1671 = vmatprep.mubr.bf16.mxu0 0
    %1672 = vmatmul.mubr.bf16.gmra.mrb[0].mxu0 %v1634
    %v1673 = vpop.f32.mrb[0].mxu0
    %v1674 = vadd.f32 0.0, %v1673
    %v1675 = vpop.f32.mrb[0].mxu0
    %v1676 = vpop.f32.mrb[0].mxu0
    %v1677 = vadd.f32 0.0, %v1676
    %v1678 = vpop.f32.mrb[0].mxu0
    %1679 = vdwg.mxu0
    %v1680 = vadd.f32 %v1500, %v1674
    %v1681 = vadd.f32 %v1503, %v1677
    %1682 = vrot.lane.b32.xlu0 %v1158, 104
    %v1683 = vpop.permute.xlu0 %1682
    %1684 = vrot.lane.b32.xlu0 %v1158, 72
    %v1685 = vpop.permute.xlu0 %1684
    %v1687 = vsel %vm135, %v1683, 0
    %v1690 = vsel %vm135, %v1685, 0
    %1692 = vmatprep.subr.bf16.mxu0 0
    %1693 = vmatpush1.bf16.xpose.msra.mxu0 %v1690
    %1694 = vmatprep.subr.bf16.mxu0 0
    %1695 = vmatpush1.bf16.xpose.msra.mxu0 0
    %1696 = vmatprep.subr.bf16.mxu0 0
    %1697 = vmatpush1.bf16.xpose.msra.mxu0 0
    %1698 = vmatprep.subr.bf16.mxu0 0
    %1699 = vmatpush1.bf16.xpose.msra.mxu0 0
    %1700 = vmatprep.subr.bf16.mxu0 0
    %1701 = vmatpush1.bf16.xpose.msra.mxu0 0
    %1702 = vmatprep.subr.bf16.mxu0 0
    %1703 = vmatpush1.bf16.xpose.msra.mxu0 0
    %1704 = vmatprep.subr.bf16.mxu0 0
    %1705 = vmatpush1.bf16.xpose.msra.mxu0 0
    %1706 = vmatprep.subr.bf16.mxu0 0
    %1707 = vmatpush1.bf16.xpose.msra.mxu0 0
    %1708 = vmatprep.subr.bf16.mxu0 0
    %1709 = vmatpush1.bf16.xpose.msra.mxu0 0
    %1710 = vmatprep.subr.bf16.mxu0 0
    %1711 = vmatpush1.bf16.xpose.msra.mxu0 0
    %1712 = vmatprep.subr.bf16.mxu0 0
    %1713 = vmatpush1.bf16.xpose.msra.mxu0 0
    %1714 = vmatprep.subr.bf16.mxu0 0
    %1715 = vmatpush1.bf16.xpose.msra.mxu0 0
    %1716 = vmatprep.subr.bf16.mxu0 0
    %1717 = vmatpush1.bf16.xpose.msra.mxu0 0
    %1718 = vmatprep.subr.bf16.mxu0 0
    %1719 = vmatpush1.bf16.xpose.msra.mxu0 0
    %1720 = vmatprep.subr.bf16.mxu0 0
    %1721 = vmatpush1.bf16.xpose.msra.mxu0 0
    %1722 = vmatprep.subr.bf16.mxu0 0
    %1723 = vmatpush1.bf16.xpose.msra.mxu0 0
    %1724 = vmatprep.mubr.bf16.mxu0 0
    %1725 = vmatmul.mubr.bf16.gmra.mrb[0].mxu0 %v1687
    %v1726 = vpop.f32.mrb[0].mxu0
    %v1727 = vadd.f32 0.0, %v1726
    %v1728 = vpop.f32.mrb[0].mxu0
    %v1729 = vpop.f32.mrb[0].mxu0
    %v1730 = vadd.f32 0.0, %v1729
    %v1731 = vpop.f32.mrb[0].mxu0
    %1732 = vdwg.mxu0
    %v1733 = vmul.f32 %v1727, 0.35355338
    %v1734 = vmul.f32 %v1730, 0.35355338
    %v1735 = vadd.f32 %v1733, %v19
    %v1736 = vadd.f32 %v1734, %v20
    %v1737 = vsel %vm187, %v1735, -inf
    %1738 = vmax.xlane.f32.xlu0 %v1737
    %v1739 = vpop.xlane.xlu0 %1738
    %v1740 = vsel %vm187, %v1736, -inf
    %1741 = vmax.xlane.f32.xlu0 %v1740
    %v1742 = vpop.xlane.xlu0 %1741
    %v1743 = vsub.f32 %v1735, %v1739
    %v1744 = vsub.f32 %v1736, %v1742
    %v1745 = vmul.f32 %v1743, 1.442695
    %v1746 = vpow.pop %v1745
    %v1747 = vmul.f32 %v1744, 1.442695
    %v1748 = vpow.pop %v1747
    %v1749 = vsel %vm187, %v1746, 0.0
    %1750 = vadd.xlane.f32.xlu0 %v1749
    %v1751 = vpop.xlane.xlu0 %1750
    %v1752 = vsel %vm187, %v1748, 0.0
    %1753 = vadd.xlane.f32.xlu0 %v1752
    %v1754 = vpop.xlane.xlu0 %1753
    %v1755 = vrcp.pop %v1751
    %v1756 = vrcp.pop %v1754
    %v1757 = vmul.f32 %v1746, %v1755
    %v1758 = vmul.f32 %v1748, %v1756
    %v1759 = vpack.c.bf16 %v1758, %v1757
    %1760 = vrot.lane.b32.xlu0 %v1158, 40
    %v1761 = vpop.permute.xlu0 %1760
    %v1764 = vsel %vm187, %v1759, 0
    %1766 = vmatprep.subr.bf16.mxu0 0
    %1767 = vmatpush1.bf16.msra.mxu0 %v1761
    %1768 = vmatprep.subr.bf16.mxu0 0
    %1769 = vmatpush1.bf16.msra.mxu0 0
    %1770 = vmatprep.subr.bf16.mxu0 0
    %1771 = vmatpush1.bf16.msra.mxu0 0
    %1772 = vmatprep.subr.bf16.mxu0 0
    %1773 = vmatpush1.bf16.msra.mxu0 0
    %1774 = vmatprep.subr.bf16.mxu0 0
    %1775 = vmatpush1.bf16.msra.mxu0 0
    %1776 = vmatprep.subr.bf16.mxu0 0
    %1777 = vmatpush1.bf16.msra.mxu0 0
    %1778 = vmatprep.subr.bf16.mxu0 0
    %1779 = vmatpush1.bf16.msra.mxu0 0
    %1780 = vmatprep.subr.bf16.mxu0 0
    %1781 = vmatpush1.bf16.msra.mxu0 0
    %1782 = vmatprep.subr.bf16.mxu0 0
    %1783 = vmatpush1.bf16.msra.mxu0 0
    %1784 = vmatprep.subr.bf16.mxu0 0
    %1785 = vmatpush1.bf16.msra.mxu0 0
    %1786 = vmatprep.subr.bf16.mxu0 0
    %1787 = vmatpush1.bf16.msra.mxu0 0
    %1788 = vmatprep.subr.bf16.mxu0 0
    %1789 = vmatpush1.bf16.msra.mxu0 0
    %1790 = vmatprep.subr.bf16.mxu0 0
    %1791 = vmatpush1.bf16.msra.mxu0 0
    %1792 = vmatprep.subr.bf16.mxu0 0
    %1793 = vmatpush1.bf16.msra.mxu0 0
    %1794 = vmatprep.subr.bf16.mxu0 0
    %1795 = vmatpush1.bf16.msra.mxu0 0
    %1796 = vmatprep.subr.bf16.mxu0 0
    %1797 = vmatpush1.bf16.msra.mxu0 0
    %1798 = vmatprep.mubr.bf16.mxu0 0
    %1799 = vmatmul.mubr.bf16.gmra.mrb[0].mxu0 %v1764
    %v1800 = vpop.f32.mrb[0].mxu0
    %v1801 = vadd.f32 0.0, %v1800
    %v1802 = vpop.f32.mrb[0].mxu0
    %v1803 = vpop.f32.mrb[0].mxu0
    %v1804 = vadd.f32 0.0, %v1803
    %v1805 = vpop.f32.mrb[0].mxu0
    %1806 = vdwg.mxu0
    %v1807 = vld [vmem:[%s2 + $0x3c] sm:$0xf]
    %v1808 = vpack.c.bf16 %v1804, %v1801
    %v1810 = vsel %vm135, %v1808, 0
    %v1813 = vsel %vm390, %v1807, 0
    %1815 = vmatprep.subr.bf16.mxu0 0
    %1816 = vmatpush1.bf16.msra.mxu0 %v1813
    %1817 = vmatprep.subr.bf16.mxu0 0
    %1818 = vmatpush1.bf16.msra.mxu0 0
    %1819 = vmatprep.subr.bf16.mxu0 0
    %1820 = vmatpush1.bf16.msra.mxu0 0
    %1821 = vmatprep.subr.bf16.mxu0 0
    %1822 = vmatpush1.bf16.msra.mxu0 0
    %1823 = vmatprep.subr.bf16.mxu0 0
    %1824 = vmatpush1.bf16.msra.mxu0 0
    %1825 = vmatprep.subr.bf16.mxu0 0
    %1826 = vmatpush1.bf16.msra.mxu0 0
    %1827 = vmatprep.subr.bf16.mxu0 0
    %1828 = vmatpush1.bf16.msra.mxu0 0
    %1829 = vmatprep.subr.bf16.mxu0 0
    %1830 = vmatpush1.bf16.msra.mxu0 0
    %1831 = vmatprep.subr.bf16.mxu0 0
    %1832 = vmatpush1.bf16.msra.mxu0 0
    %1833 = vmatprep.subr.bf16.mxu0 0
    %1834 = vmatpush1.bf16.msra.mxu0 0
    %1835 = vmatprep.subr.bf16.mxu0 0
    %1836 = vmatpush1.bf16.msra.mxu0 0
    %1837 = vmatprep.subr.bf16.mxu0 0
    %1838 = vmatpush1.bf16.msra.mxu0 0
    %1839 = vmatprep.subr.bf16.mxu0 0
    %1840 = vmatpush1.bf16.msra.mxu0 0
    %1841 = vmatprep.subr.bf16.mxu0 0
    %1842 = vmatpush1.bf16.msra.mxu0 0
    %1843 = vmatprep.subr.bf16.mxu0 0
    %1844 = vmatpush1.bf16.msra.mxu0 0
    %1845 = vmatprep.subr.bf16.mxu0 0
    %1846 = vmatpush1.bf16.msra.mxu0 0
    %1847 = vmatprep.mubr.bf16.mxu0 0
    %1848 = vmatmul.mubr.bf16.gmra.mrb[0].mxu0 %v1810
    %v1849 = vpop.f32.mrb[0].mxu0
    %v1850 = vadd.f32 0.0, %v1849
    %v1851 = vpop.f32.mrb[0].mxu0
    %v1852 = vpop.f32.mrb[0].mxu0
    %v1853 = vadd.f32 0.0, %v1852
    %v1854 = vpop.f32.mrb[0].mxu0
    %1855 = vdwg.mxu0
    %v1856 = vadd.f32 %v1680, %v1850
    %v1857 = vadd.f32 %v1681, %v1853
    %v1858 = vld [vmem:[%s3 + $0xd] sm:$0x1]
    %v1859 = vlaneseq
    %v1860 = vshrl.u32 %v1859, 7
    %v1861 = vsub.s32 0, %v1860
    %v1862 = vrot.slane %v1858, %v1861
    %v1863 = vadd.f32 %v1856, %v1862
    %v1864 = vadd.f32 %v1857, %v1862
    %v1865 = vadd.f32 %v1863, %v1090
    %v1866 = vadd.f32 %v1864, %v1091
    %v1867 = vld [vmem:[%s3 + $0xe] sm:$0x1]
    %v1868 = vld [vmem:[%s3 + $0xf] sm:$0x1]
    %v1869 = vsel %vm25, %v1865, 0.0
    %1870 = vadd.xlane.f32.xlu0 %v1869
    %v1871 = vpop.xlane.xlu0 %1870
    %v1872 = vsel %vm25, %v1866, 0.0
    %1873 = vadd.xlane.f32.xlu0 %v1872
    %v1874 = vpop.xlane.xlu0 %1873
    %v1875 = vmul.f32 %v1871, %v32
    %v1876 = vmul.f32 %v1874, %v32
    %v1877 = vsub.f32 %v1865, %v1875
    %v1878 = vsub.f32 %v1866, %v1876
    %v1879 = vmul.f32 %v1877, %v1877
    %v1880 = vmul.f32 %v1878, %v1878
    %v1881 = vsel %vm25, %v1879, 0.0
    %1882 = vadd.xlane.f32.xlu0 %v1881
    %v1883 = vpop.xlane.xlu0 %1882
    %v1884 = vsel %vm25, %v1880, 0.0
    %1885 = vadd.xlane.f32.xlu0 %v1884
    %v1886 = vpop.xlane.xlu0 %1885
    %v1887 = vmul.f32 %v1883, %v32
    %v1888 = vmul.f32 %v1886, %v32
    %v1889 = vadd.f32 %v1887, 1e-12
    %v1890 = vadd.f32 %v1888, 1e-12
    %v1891 = vrsqrt.pop %v1889
    %v1892 = vrsqrt.pop %v1890
    %v1893 = vmul.f32 %v1877, %v1891
    %v1894 = vmul.f32 %v1878, %v1892
    %v1895 = vlaneseq
    %v1896 = vshrl.u32 %v1895, 7
    %v1897 = vsub.s32 0, %v1896
    %v1898 = vrot.slane %v1867, %v1897
    %v1899 = vmul.f32 %v1893, %v1898
    %v1900 = vmul.f32 %v1894, %v1898
    %v1901 = vlaneseq
    %v1902 = vshrl.u32 %v1901, 7
    %v1903 = vsub.s32 0, %v1902
    %v1904 = vrot.slane %v1868, %v1903
    %v1905 = vadd.f32 %v1899, %v1904
    %v1906 = vadd.f32 %v1900, %v1904
    %v1907 = vpack.c.bf16 %v1906, %v1905
    %v1908 = vld [vmem:[%s2 + $0x50] sm:$0xf]
    %v1909 = vld [vmem:[%s2 + $0x54] sm:$0xf]
    %v1910 = vld [vmem:[%s2 + $0x58] sm:$0xf]
    %v1911 = vld [vmem:[%s2 + $0x5c] sm:$0xf]
    %v1912 = vld [vmem:[%s3 + $0x10] sm:$0x1]
    %v1913 = vlaneseq
    %v1914 = vshrl.u32 %v1913, 7
    %v1915 = vsub.s32 0, %v1914
    %v1916 = vrot.slane %v1912, %v1915
    %v1921 = vunpack.c.l.b16 %v1908
    %v1922 = vunpack.c.l.b16 %v1909
    %v1923 = vunpack.c.l.b16 %v1910
    %v1924 = vunpack.c.l.b16 %v1911
    %v1925 = vpack.c.b16 %v1922, %v1921
    %v1926 = vpack.c.b16 %v1924, %v1923
    %v1930 = vsel %vm25, %v1907, 0
    %1932 = vmatprep.subr.bf16.mxu0 0
    %1933 = vmatpush1.bf16.msra.mxu0 %v1925
    %1934 = vmatprep.subr.bf16.mxu0 0
    %1935 = vmatpush1.bf16.msra.mxu0 %v1926
    %1936 = vmatprep.subr.bf16.mxu0 0
    %1937 = vmatpush1.bf16.msra.mxu0 0
    %1938 = vmatprep.subr.bf16.mxu0 0
    %1939 = vmatpush1.bf16.msra.mxu0 0
    %1940 = vmatprep.subr.bf16.mxu0 0
    %1941 = vmatpush1.bf16.msra.mxu0 0
    %1942 = vmatprep.subr.bf16.mxu0 0
    %1943 = vmatpush1.bf16.msra.mxu0 0
    %1944 = vmatprep.subr.bf16.mxu0 0
    %1945 = vmatpush1.bf16.msra.mxu0 0
    %1946 = vmatprep.subr.bf16.mxu0 0
    %1947 = vmatpush1.bf16.msra.mxu0 0
    %1948 = vmatprep.subr.bf16.mxu0 0
    %1949 = vmatpush1.bf16.msra.mxu0 0
    %1950 = vmatprep.subr.bf16.mxu0 0
    %1951 = vmatpush1.bf16.msra.mxu0 0
    %1952 = vmatprep.subr.bf16.mxu0 0
    %1953 = vmatpush1.bf16.msra.mxu0 0
    %1954 = vmatprep.subr.bf16.mxu0 0
    %1955 = vmatpush1.bf16.msra.mxu0 0
    %1956 = vmatprep.subr.bf16.mxu0 0
    %1957 = vmatpush1.bf16.msra.mxu0 0
    %1958 = vmatprep.subr.bf16.mxu0 0
    %1959 = vmatpush1.bf16.msra.mxu0 0
    %1960 = vmatprep.subr.bf16.mxu0 0
    %1961 = vmatpush1.bf16.msra.mxu0 0
    %1962 = vmatprep.subr.bf16.mxu0 0
    %1963 = vmatpush1.bf16.msra.mxu0 0
    %1964 = vmatprep.mubr.bf16.mxu0 0
    %1965 = vmatmul.mubr.bf16.gmra.mrb[0].mxu0 %v1930
    %v1966 = vpop.f32.mrb[0].mxu0
    %v1967 = vadd.f32 %v1916, %v1966
    %v1968 = vpop.f32.mrb[0].mxu0
    %v1969 = vpop.f32.mrb[0].mxu0
    %v1970 = vadd.f32 %v1916, %v1969
    %v1971 = vpop.f32.mrb[0].mxu0
    %1972 = vdwg.mxu0
    %v1973 = vmul.f32 %v1967, 0.5
    %v1974 = vmul.f32 %v1970, 0.5
    %v1975 = vmul.f32 %v1967, 0.044715
    %v1976 = vmul.f32 %v1970, 0.044715
    %v1977 = vmul.f32 %v1975, %v1967
    %v1978 = vmul.f32 %v1976, %v1970
    %v1979 = vmul.f32 %v1977, %v1967
    %v1980 = vmul.f32 %v1978, %v1970
    %v1981 = vadd.f32 %v1967, %v1979
    %v1982 = vadd.f32 %v1970, %v1980
    %v1983 = vmul.f32 %v1981, 0.7978846
    %v1984 = vmul.f32 %v1982, 0.7978846
    %v1985 = vtanh.pop %v1983
    %v1986 = vtanh.pop %v1984
    %v1987 = vadd.f32 %v1985, 1.0
    %v1988 = vadd.f32 %v1986, 1.0
    %v1989 = vmul.f32 %v1973, %v1987
    %v1990 = vmul.f32 %v1974, %v1988
    %v1991 = vpack.c.bf16 %v1990, %v1989
    %v1992 = vld [vmem:[%s2 + $0x80] sm:$0xf]
    %v1993 = vld [vmem:[%s2 + $0x84] sm:$0xf]
    %v1994 = vld [vmem:[%s2 + $0x88] sm:$0xf]
    %v1995 = vld [vmem:[%s2 + $0x8c] sm:$0xf]
    %v1996 = vld [vmem:[%s2 + $0x90] sm:$0xf]
    %v1997 = vld [vmem:[%s2 + $0x94] sm:$0xf]
    %v1998 = vld [vmem:[%s2 + $0x98] sm:$0xf]
    %v1999 = vld [vmem:[%s2 + $0x9c] sm:$0xf]
    %v2000 = vld [vmem:[%s3 + $0x11] sm:$0x1]
    %v2001 = vlaneseq
    %v2002 = vshrl.u32 %v2001, 7
    %v2003 = vsub.s32 0, %v2002
    %v2004 = vrot.slane %v2000, %v2003
    %v2013 = vunpack.c.l.b16 %v1992
    %v2014 = vunpack.c.l.b16 %v1993
    %v2015 = vunpack.c.l.b16 %v1994
    %v2016 = vunpack.c.l.b16 %v1995
    %v2017 = vunpack.c.l.b16 %v1996
    %v2018 = vunpack.c.l.b16 %v1997
    %v2019 = vunpack.c.l.b16 %v1998
    %v2020 = vunpack.c.l.b16 %v1999
    %v2021 = vpack.c.b16 %v2014, %v2013
    %v2022 = vpack.c.b16 %v2016, %v2015
    %v2023 = vpack.c.b16 %v2018, %v2017
    %v2024 = vpack.c.b16 %v2020, %v2019
    %v2030 = vsel %vm1005, %v1991, 0
    %2032 = vmatprep.subr.bf16.mxu0 0
    %2033 = vmatpush1.bf16.msra.mxu0 %v2021
    %2034 = vmatprep.subr.bf16.mxu0 0
    %2035 = vmatpush1.bf16.msra.mxu0 %v2022
    %2036 = vmatprep.subr.bf16.mxu0 0
    %2037 = vmatpush1.bf16.msra.mxu0 %v2023
    %2038 = vmatprep.subr.bf16.mxu0 0
    %2039 = vmatpush1.bf16.msra.mxu0 %v2024
    %2040 = vmatprep.subr.bf16.mxu0 0
    %2041 = vmatpush1.bf16.msra.mxu0 0
    %2042 = vmatprep.subr.bf16.mxu0 0
    %2043 = vmatpush1.bf16.msra.mxu0 0
    %2044 = vmatprep.subr.bf16.mxu0 0
    %2045 = vmatpush1.bf16.msra.mxu0 0
    %2046 = vmatprep.subr.bf16.mxu0 0
    %2047 = vmatpush1.bf16.msra.mxu0 0
    %2048 = vmatprep.subr.bf16.mxu0 0
    %2049 = vmatpush1.bf16.msra.mxu0 0
    %2050 = vmatprep.subr.bf16.mxu0 0
    %2051 = vmatpush1.bf16.msra.mxu0 0
    %2052 = vmatprep.subr.bf16.mxu0 0
    %2053 = vmatpush1.bf16.msra.mxu0 0
    %2054 = vmatprep.subr.bf16.mxu0 0
    %2055 = vmatpush1.bf16.msra.mxu0 0
    %2056 = vmatprep.subr.bf16.mxu0 0
    %2057 = vmatpush1.bf16.msra.mxu0 0
    %2058 = vmatprep.subr.bf16.mxu0 0
    %2059 = vmatpush1.bf16.msra.mxu0 0
    %2060 = vmatprep.subr.bf16.mxu0 0
    %2061 = vmatpush1.bf16.msra.mxu0 0
    %2062 = vmatprep.subr.bf16.mxu0 0
    %2063 = vmatpush1.bf16.msra.mxu0 0
    %2064 = vmatprep.mubr.bf16.mxu0 0
    %2065 = vmatmul.mubr.bf16.gmra.mrb[0].mxu0 %v2030
    %v2066 = vpop.f32.mrb[0].mxu0
    %v2067 = vadd.f32 %v2004, %v2066
    %v2068 = vpop.f32.mrb[0].mxu0
    %v2069 = vpop.f32.mrb[0].mxu0
    %v2070 = vadd.f32 %v2004, %v2069
    %v2071 = vpop.f32.mrb[0].mxu0
    %2072 = vdwg.mxu0
    %v2073 = vadd.f32 %v2067, %v1905
    %v2074 = vadd.f32 %v2070, %v1906
    %v2075 = vld [vmem:[%s3 + $0x12] sm:$0x1]
    %v2076 = vld [vmem:[%s3 + $0x13] sm:$0x1]
    %v2077 = vsel %vm25, %v2073, 0.0
    %2078 = vadd.xlane.f32.xlu0 %v2077
    %v2079 = vpop.xlane.xlu0 %2078
    %v2080 = vsel %vm25, %v2074, 0.0
    %2081 = vadd.xlane.f32.xlu0 %v2080
    %v2082 = vpop.xlane.xlu0 %2081
    %v2083 = vmul.f32 %v2079, %v32
    %v2084 = vmul.f32 %v2082, %v32
    %v2085 = vsub.f32 %v2073, %v2083
    %v2086 = vsub.f32 %v2074, %v2084
    %v2087 = vmul.f32 %v2085, %v2085
    %v2088 = vmul.f32 %v2086, %v2086
    %v2089 = vsel %vm25, %v2087, 0.0
    %2090 = vadd.xlane.f32.xlu0 %v2089
    %v2091 = vpop.xlane.xlu0 %2090
    %v2092 = vsel %vm25, %v2088, 0.0
    %2093 = vadd.xlane.f32.xlu0 %v2092
    %v2094 = vpop.xlane.xlu0 %2093
    %v2095 = vmul.f32 %v2091, %v32
    %v2096 = vmul.f32 %v2094, %v32
    %v2097 = vadd.f32 %v2095, 1e-12
    %v2098 = vadd.f32 %v2096, 1e-12
    %v2099 = vrsqrt.pop %v2097
    %v2100 = vrsqrt.pop %v2098
    %v2101 = vmul.f32 %v2085, %v2099
    %v2102 = vmul.f32 %v2086, %v2100
    %v2103 = vlaneseq
    %v2104 = vshrl.u32 %v2103, 7
    %v2105 = vsub.s32 0, %v2104
    %v2106 = vrot.slane %v2075, %v2105
    %v2107 = vmul.f32 %v2101, %v2106
    %v2108 = vmul.f32 %v2102, %v2106
    %v2109 = vlaneseq
    %v2110 = vshrl.u32 %v2109, 7
    %v2111 = vsub.s32 0, %v2110
    %v2112 = vrot.slane %v2076, %v2111
    %v2113 = vadd.f32 %v2107, %v2112
    %v2114 = vadd.f32 %v2108, %v2112
    %v2116 = vrot.slane %v2114, 7
    %vm2118 = vcmask 1040384
    %v2119 = vsel %vm2118, %v2113, %v2116
    %v2120 = vpack.c.bf16 %v2119, %v2119
    %v2121 = vld [vmem:[%s2 + $0xa0] sm:$0xf]
    %v2122 = vld [vmem:[%s2 + $0xa4] sm:$0xf]
    %v2123 = vld [vmem:[%s2 + $0xa8] sm:$0xf]
    %v2124 = vld [vmem:[%s2 + $0xac] sm:$0xf]
    %v2125 = vld [vmem:[%s3 + $0x2] sm:$0x1]
    %v2126 = vlaneseq
    %v2127 = vshrl.u32 %v2126, 7
    %v2128 = vsub.s32 0, %v2127
    %v2129 = vrot.slane %v2125, %v2128
    %v2134 = vunpack.c.l.b16 %v2121
    %v2135 = vunpack.c.l.b16 %v2122
    %v2136 = vunpack.c.l.b16 %v2123
    %v2137 = vunpack.c.l.b16 %v2124
    %v2138 = vpack.c.b16 %v2135, %v2134
    %v2139 = vpack.c.b16 %v2137, %v2136
    %v2143 = vsel %vm25, %v2120, 0
    %2145 = vmatprep.subr.bf16.mxu0 0
    %2146 = vmatpush1.bf16.msra.mxu0 %v2138
    %2147 = vmatprep.subr.bf16.mxu0 0
    %2148 = vmatpush1.bf16.msra.mxu0 %v2139
    %2149 = vmatprep.subr.bf16.mxu0 0
    %2150 = vmatpush1.bf16.msra.mxu0 0
    %2151 = vmatprep.subr.bf16.mxu0 0
    %2152 = vmatpush1.bf16.msra.mxu0 0
    %2153 = vmatprep.subr.bf16.mxu0 0
    %2154 = vmatpush1.bf16.msra.mxu0 0
    %2155 = vmatprep.subr.bf16.mxu0 0
    %2156 = vmatpush1.bf16.msra.mxu0 0
    %2157 = vmatprep.subr.bf16.mxu0 0
    %2158 = vmatpush1.bf16.msra.mxu0 0
    %2159 = vmatprep.subr.bf16.mxu0 0
    %2160 = vmatpush1.bf16.msra.mxu0 0
    %2161 = vmatprep.subr.bf16.mxu0 0
    %2162 = vmatpush1.bf16.msra.mxu0 0
    %2163 = vmatprep.subr.bf16.mxu0 0
    %2164 = vmatpush1.bf16.msra.mxu0 0
    %2165 = vmatprep.subr.bf16.mxu0 0
    %2166 = vmatpush1.bf16.msra.mxu0 0
    %2167 = vmatprep.subr.bf16.mxu0 0
    %2168 = vmatpush1.bf16.msra.mxu0 0
    %2169 = vmatprep.subr.bf16.mxu0 0
    %2170 = vmatpush1.bf16.msra.mxu0 0
    %2171 = vmatprep.subr.bf16.mxu0 0
    %2172 = vmatpush1.bf16.msra.mxu0 0
    %2173 = vmatprep.subr.bf16.mxu0 0
    %2174 = vmatpush1.bf16.msra.mxu0 0
    %2175 = vmatprep.subr.bf16.mxu0 0
    %2176 = vmatpush1.bf16.msra.mxu0 0
    %2177 = vmatprep.mubr.bf16.mxu0 0
    %2178 = vmatmul.mubr.bf16.gmra.mrb[0].mxu0 %v2143
    %v2179 = vpop.f32.mrb[0].mxu0
    %v2180 = vadd.f32 %v2129, %v2179
    %v2181 = vpop.f32.mrb[0].mxu0
    %v2182 = vpop.f32.mrb[0].mxu0
    %v2183 = vpop.f32.mrb[0].mxu0
    %2184 = vdwg.mxu0
    %v2185 = vtanh.pop %v2180
    %v2186 = vpack.c.bf16 %v2185, %v2185
    %v2187 = vld [vmem:[%s2 + $0xb0] sm:$0xf]
    %v2188 = vld [vmem:[%s2 + $0xb4] sm:$0xf]
    %v2189 = vld [vmem:[%s2 + $0xb8] sm:$0xf]
    %v2190 = vld [vmem:[%s2 + $0xbc] sm:$0xf]
    %v2191 = vld [vmem:[%s3 + $0x3] sm:$0x1]
    %v2192 = vlaneseq
    %v2193 = vshrl.u32 %v2192, 7
    %v2194 = vsub.s32 0, %v2193
    %v2195 = vrot.slane %v2191, %v2194
    %v2200 = vunpack.c.l.b16 %v2187
    %v2201 = vunpack.c.l.b16 %v2188
    %v2202 = vunpack.c.l.b16 %v2189
    %v2203 = vunpack.c.l.b16 %v2190
    %v2204 = vpack.c.b16 %v2201, %v2200
    %v2205 = vpack.c.b16 %v2203, %v2202
    %v2209 = vsel %vm25, %v2186, 0
    %2211 = vmatprep.subr.bf16.mxu0 0
    %2212 = vmatpush1.bf16.msra.mxu0 %v2204
    %2213 = vmatprep.subr.bf16.mxu0 0
    %2214 = vmatpush1.bf16.msra.mxu0 %v2205
    %2215 = vmatprep.subr.bf16.mxu0 0
    %2216 = vmatpush1.bf16.msra.mxu0 0
    %2217 = vmatprep.subr.bf16.mxu0 0
    %2218 = vmatpush1.bf16.msra.mxu0 0
    %2219 = vmatprep.subr.bf16.mxu0 0
    %2220 = vmatpush1.bf16.msra.mxu0 0
    %2221 = vmatprep.subr.bf16.mxu0 0
    %2222 = vmatpush1.bf16.msra.mxu0 0
    %2223 = vmatprep.subr.bf16.mxu0 0
    %2224 = vmatpush1.bf16.msra.mxu0 0
    %2225 = vmatprep.subr.bf16.mxu0 0
    %2226 = vmatpush1.bf16.msra.mxu0 0
    %2227 = vmatprep.subr.bf16.mxu0 0
    %2228 = vmatpush1.bf16.msra.mxu0 0
    %2229 = vmatprep.subr.bf16.mxu0 0
    %2230 = vmatpush1.bf16.msra.mxu0 0
    %2231 = vmatprep.subr.bf16.mxu0 0
    %2232 = vmatpush1.bf16.msra.mxu0 0
    %2233 = vmatprep.subr.bf16.mxu0 0
    %2234 = vmatpush1.bf16.msra.mxu0 0
    %2235 = vmatprep.subr.bf16.mxu0 0
    %2236 = vmatpush1.bf16.msra.mxu0 0
    %2237 = vmatprep.subr.bf16.mxu0 0
    %2238 = vmatpush1.bf16.msra.mxu0 0
    %2239 = vmatprep.subr.bf16.mxu0 0
    %2240 = vmatpush1.bf16.msra.mxu0 0
    %2241 = vmatprep.subr.bf16.mxu0 0
    %2242 = vmatpush1.bf16.msra.mxu0 0
    %2243 = vmatprep.mubr.bf16.mxu0 0
    %2244 = vmatmul.mubr.bf16.gmra.mrb[0].mxu0 %v2209
    %v2245 = vpop.f32.mrb[0].mxu0
    %v2246 = vadd.f32 %v2195, %v2245
    %v2247 = vpop.f32.mrb[0].mxu0
    %v2248 = vpop.f32.mrb[0].mxu0
    %v2249 = vpop.f32.mrb[0].mxu0
    %2250 = vdwg.mxu0
    %2251 = vst [vmem:[#allocation2] sm:$0x3] %v2246
    // Predicated region
    $region18: #{intent_recognizer_forward.1} parent=1 // pred_check
      _
    $region19: #{intent_recognizer_forward.1} parent=1 // pred_check_branch
      %2253 = sbr.rel (0) target = $region21
    $region20: #{intent_recognizer_forward.1} parent=1 // pred_region
      %s2255 = ssub.s32 32, 32
      %2256 = vsyncadd [#allocation3], %s2255
      %s2258 = sshll.u32 [#allocation2], 4
      %s2259 = int_to_ptr.vmem [resolvable:$true] %s2258
      %2261 = dma.vmem_to_hbm [thread:$0]  %s2259, 32, %s4, [#allocation3]
    $region21: #{intent_recognizer_forward.1} parent=1 // pred_fallthru
      _
    // Predicated region
    $region22: #{intent_recognizer_forward.1} parent=1 // pred_check
      _
    $region23: #{intent_recognizer_forward.1} parent=1 // pred_check_branch
      %2263 = sbr.rel (0) target = $region25
    $region24: #{intent_recognizer_forward.1} parent=1 // pred_region
      %2264 = dma.done [#allocation3], 32
    $region25: #{intent_recognizer_forward.1} parent=1 // pred_fallthru
      _
    %2265 = vsyncpa [#allocation3], 1

</llo_original>
